<compile_context>
chip_gen: v7x
topology: tpu7x:2x2x1
jax: 0.10.0
libtpu: 0.0.40
codegen_flags: <defaults>
</compile_context>

<pallas_src>
import functools

import jax
import jax.numpy as jnp
from jax.experimental import pallas as pl
from jax.experimental.pallas import tpu as pltpu


def emotion_encoder_kernel(x_ref, wqkv_ref, bqkv_ref, wo_ref, bo_ref,
                           wa_ref, ba_ref, qv_ref, out_ref, *, num_heads):
    """One grid step = one block of batch rows. x_ref block: (Bb, S, E)."""
    x = x_ref[...]                                   # (Bb, S, E)
    Bb, S, E = x.shape
    dh = E // num_heads

    # ---- fused QKV in-projection at M = Bb*S (weights pre-transposed,
    #      q-scale already folded into wq/bq) ----
    x2 = x.reshape(Bb * S, E)
    qkv = jnp.dot(x2, wqkv_ref[...],
                  preferred_element_type=jnp.float32) + bqkv_ref[...]   # (Bb*S, 3E)
    q = qkv[:, :E].reshape(Bb, S, E)
    k = qkv[:, E:2 * E].reshape(Bb, S, E)
    v = qkv[:, 2 * E:].reshape(Bb, S, E)

    # ---- per-head scaled dot-product attention, batched over the batch block ----
    head_outs = []
    for h in range(num_heads):                       # static, small (H=4)
        qh = q[:, :, h * dh:(h + 1) * dh]            # (Bb, S, dh)
        kh = k[:, :, h * dh:(h + 1) * dh]
        vh = v[:, :, h * dh:(h + 1) * dh]
        s = jnp.einsum('bsd,btd->bst', qh, kh,
                       preferred_element_type=jnp.float32)               # (Bb, S, S)
        s = s - jnp.max(s, axis=-1, keepdims=True)
        p = jnp.exp(s)
        p = p * pl.reciprocal(jnp.sum(p, axis=-1, keepdims=True), approx=True)
        head_outs.append(jnp.einsum('bst,btd->bsd', p, vh,
                                    preferred_element_type=jnp.float32)) # (Bb, S, dh)
    attn = jnp.concatenate(head_outs, axis=-1)       # (Bb, S, E)

    # ---- output projection at M = Bb*S ----
    mha = jnp.dot(attn.reshape(Bb * S, E), wo_ref[...],
                  preferred_element_type=jnp.float32) + bo_ref[...]      # (Bb*S, E)

    # ---- additive attention pooling over the sequence dim ----
    t = jnp.tanh(jnp.dot(mha, wa_ref[...],
                         preferred_element_type=jnp.float32) + ba_ref[...])  # (Bb*S, Qd)
    t3 = t.reshape(Bb, S, -1)
    sc = jnp.sum(t3 * qv_ref[...], axis=-1, keepdims=True)               # (Bb, S, 1)
    sc = sc - jnp.max(sc, axis=1, keepdims=True)
    w = jnp.exp(sc)
    w = w * pl.reciprocal(jnp.sum(w, axis=1, keepdims=True), approx=True)  # softmax over S
    out = jnp.sum(w * mha.reshape(Bb, S, E), axis=1)                     # (Bb, E)
    out_ref[...] = out


def fuse_params(params, num_heads):
    """One-time host-side weight prep: fuse QKV, fold q-scale, pre-transpose."""
    E = params["wq"].shape[0]
    Qd = params["wa"].shape[0]
    scale = 1.0 / ((E // num_heads) ** 0.5)
    return {
        "wqkv_t": jnp.concatenate(
            [params["wq"] * scale, params["wk"], params["wv"]], axis=0).T,  # (E, 3E)
        "bqkv": jnp.concatenate(
            [params["bq"] * scale, params["bk"], params["bv"]], axis=1),    # (1, 3E)
        "wo_t": params["wo"].T,                                             # (E, E)
        "bo": params["bo"],                                                 # (1, E)
        "wa_t": params["wa"].T,                                             # (E, Qd)
        "ba": params["ba"],                                                 # (1, Qd)
        "qv": params["qv"].reshape(1, Qd),                                  # (1, Qd)
    }


def emotion_encoder(x, fused, num_heads):
    """x: (B, S, E) float32 -> (B, E) float32."""
    B, S, E = x.shape
    Qd = fused["wa_t"].shape[1]

    # Batch-block size: whole batch for small B, else 8 rows per step.
    block_b = B if B <= 8 else 8
    assert B % block_b == 0, "batch must divide block_b for this demo"

    kernel = functools.partial(emotion_encoder_kernel, num_heads=num_heads)
    full2 = lambda b: (0, 0)   # weights resident across all grid steps

    return pl.pallas_call(
        kernel,
        out_shape=jax.ShapeDtypeStruct((B, E), jnp.float32),
        grid_spec=pl.GridSpec(
            grid=(B // block_b,),
            in_specs=[
                pl.BlockSpec((block_b, S, E), lambda b: (b, 0, 0)),  # emotions
                pl.BlockSpec((E, 3 * E), full2),                     # fused Wqkv^T
                pl.BlockSpec((1, 3 * E), full2),                     # fused b_qkv
                pl.BlockSpec((E, E), full2),                         # Wo^T
                pl.BlockSpec((1, E), full2),                         # bo
                pl.BlockSpec((E, Qd), full2),                        # Wa^T
                pl.BlockSpec((1, Qd), full2),                        # ba
                pl.BlockSpec((1, Qd), full2),                        # query vector
            ],
            out_specs=pl.BlockSpec((block_b, E), lambda b: (b, 0)),
        ),
        compiler_params=pltpu.CompilerParams(
            dimension_semantics=("parallel",)),
    )(x, fused["wqkv_t"], fused["bqkv"], fused["wo_t"], fused["bo"],
      fused["wa_t"], fused["ba"], fused["qv"])


def init_params(key, emotion_dim, query_vector_dim):
    """Deterministic synthetic parameters matching nn.MultiheadAttention +
    AdditiveAttention shapes (no checkpoint load)."""
    E, Qd = emotion_dim, query_vector_dim
    ks = jax.random.split(key, 12)
    s = 0.1
    return {
        "wq": jax.random.normal(ks[0], (E, E), jnp.float32) * s,
        "bq": jax.random.normal(ks[1], (1, E), jnp.float32) * s,
        "wk": jax.random.normal(ks[2], (E, E), jnp.float32) * s,
        "bk": jax.random.normal(ks[3], (1, E), jnp.float32) * s,
        "wv": jax.random.normal(ks[4], (E, E), jnp.float32) * s,
        "bv": jax.random.normal(ks[5], (1, E), jnp.float32) * s,
        "wo": jax.random.normal(ks[6], (E, E), jnp.float32) * s,
        "bo": jax.random.normal(ks[7], (1, E), jnp.float32) * s,
        "wa": jax.random.normal(ks[8], (Qd, E), jnp.float32) * s,
        "ba": jax.random.normal(ks[9], (1, Qd), jnp.float32) * s,
        "qv": jax.random.uniform(ks[10], (Qd, 1), jnp.float32, -0.1, 0.1),
    }


if __name__ == "__main__":
    # config: emotion_dim=32, num_attention_heads_emotions=4, query_vector_dim=32
    B, S, E, H, Qd = 2, 8, 32, 4, 32

    key = jax.random.PRNGKey(0)
    k_x, k_p = jax.random.split(key)
    emotions = jax.random.normal(k_x, (B, S, E), jnp.float32)
    params = init_params(k_p, E, Qd)
    fused = fuse_params(params, num_heads=H)   # one-time host-side prep

    emotion_vector = emotion_encoder(emotions, fused, num_heads=H)
    emotion_vector = jax.block_until_ready(emotion_vector)

    assert emotion_vector.shape == (B, E)
    assert emotion_vector.dtype == jnp.float32
    print("KERNEL_OK")
</pallas_src>

<mosaic_0001>
module attributes {stable_mosaic.version = 11 : i64} {
  func.func @emotion_encoder_kernel(%arg0: i32, %arg1: memref<2x8x32xf32, #tpu.memory_space<vmem>>, %arg2: memref<32x96xf32, #tpu.memory_space<vmem>>, %arg3: memref<1x96xf32, #tpu.memory_space<vmem>>, %arg4: memref<32x32xf32, #tpu.memory_space<vmem>>, %arg5: memref<1x32xf32, #tpu.memory_space<vmem>>, %arg6: memref<32x32xf32, #tpu.memory_space<vmem>>, %arg7: memref<1x32xf32, #tpu.memory_space<vmem>>, %arg8: memref<1x32xf32, #tpu.memory_space<vmem>>, %arg9: memref<2x32xf32, #tpu.memory_space<vmem>>) attributes {dimension_semantics = [#tpu.dimension_semantics<parallel>], iteration_bounds = array<i64: 1>, scalar_prefetch = 0 : i64, scratch_operands = 0 : i64, tpu.core_type = #tpu.core_type<tc>, window_params = [{transform_indices = @transform_0, window_bounds = array<i64: 2, 8, 32>}, {pipeline_mode = #tpu.pipeline_mode<synchronous>, transform_indices = @transform_1, window_bounds = array<i64: 32, 96>}, {pipeline_mode = #tpu.pipeline_mode<synchronous>, transform_indices = @transform_2, window_bounds = array<i64: 1, 96>}, {pipeline_mode = #tpu.pipeline_mode<synchronous>, transform_indices = @transform_3, window_bounds = array<i64: 32, 32>}, {pipeline_mode = #tpu.pipeline_mode<synchronous>, transform_indices = @transform_4, window_bounds = array<i64: 1, 32>}, {pipeline_mode = #tpu.pipeline_mode<synchronous>, transform_indices = @transform_5, window_bounds = array<i64: 32, 32>}, {pipeline_mode = #tpu.pipeline_mode<synchronous>, transform_indices = @transform_6, window_bounds = array<i64: 1, 32>}, {pipeline_mode = #tpu.pipeline_mode<synchronous>, transform_indices = @transform_7, window_bounds = array<i64: 1, 32>}, {transform_indices = @transform_8, window_bounds = array<i64: 2, 32>}]} {
    %c0 = arith.constant 0 : index
    %c0_0 = arith.constant 0 : index
    %c0_1 = arith.constant 0 : index
    %0 = vector.load %arg1[%c0, %c0_0, %c0_1] : memref<2x8x32xf32, #tpu.memory_space<vmem>>, vector<2x8x32xf32>
    %1 = vector.shape_cast %0 : vector<2x8x32xf32> to vector<16x32xf32>
    %c0_2 = arith.constant 0 : index
    %c0_3 = arith.constant 0 : index
    %2 = vector.load %arg2[%c0_2, %c0_3] : memref<32x96xf32, #tpu.memory_space<vmem>>, vector<32x96xf32>
    %cst = arith.constant dense<0.000000e+00> : vector<16x96xf32>
    %3 = tpu.matmul %1, %2, %cst {dimension_numbers = #tpu.dot_dimension_numbers<[1], [0], [0], [1], [0, 0, 1, 1], [], []>} : vector<16x32xf32>, vector<32x96xf32>, vector<16x96xf32> -> vector<16x96xf32>
    %c0_4 = arith.constant 0 : index
    %c0_5 = arith.constant 0 : index
    %4 = vector.load %arg3[%c0_4, %c0_5] : memref<1x96xf32, #tpu.memory_space<vmem>>, vector<1x96xf32>
    %5 = vector.broadcast %4 : vector<1x96xf32> to vector<16x96xf32>
    %6 = arith.addf %3, %5 : vector<16x96xf32>
    %7 = vector.extract_strided_slice %6 {offsets = [0, 0], sizes = [16, 32], strides = [1, 1]} : vector<16x96xf32> to vector<16x32xf32>
    %8 = vector.shape_cast %7 : vector<16x32xf32> to vector<2x8x32xf32>
    %9 = vector.extract_strided_slice %6 {offsets = [0, 32], sizes = [16, 32], strides = [1, 1]} : vector<16x96xf32> to vector<16x32xf32>
    %10 = vector.shape_cast %9 : vector<16x32xf32> to vector<2x8x32xf32>
    %11 = vector.extract_strided_slice %6 {offsets = [0, 64], sizes = [16, 32], strides = [1, 1]} : vector<16x96xf32> to vector<16x32xf32>
    %12 = vector.shape_cast %11 : vector<16x32xf32> to vector<2x8x32xf32>
    %13 = vector.extract_strided_slice %8 {offsets = [0, 0, 0], sizes = [2, 8, 8], strides = [1, 1, 1]} : vector<2x8x32xf32> to vector<2x8x8xf32>
    %14 = vector.extract_strided_slice %10 {offsets = [0, 0, 0], sizes = [2, 8, 8], strides = [1, 1, 1]} : vector<2x8x32xf32> to vector<2x8x8xf32>
    %15 = vector.extract_strided_slice %12 {offsets = [0, 0, 0], sizes = [2, 8, 8], strides = [1, 1, 1]} : vector<2x8x32xf32> to vector<2x8x8xf32>
    "tpu.trace_start"() <{level = 10 : i32, message = "bsd,btd->bst"}> : () -> ()
    %cst_6 = arith.constant dense<0.000000e+00> : vector<2x8x8xf32>
    %16 = tpu.matmul %13, %14, %cst_6 {dimension_numbers = #tpu.dot_dimension_numbers<[2], [2], [1], [1], [0, 0, 0, 1, 1, 1], [0], [0]>} : vector<2x8x8xf32>, vector<2x8x8xf32>, vector<2x8x8xf32> -> vector<2x8x8xf32>
    "tpu.trace_stop"() : () -> ()
    %cst_7 = arith.constant dense<0xFF800000> : vector<2x8xf32>
    %17 = vector.multi_reduction <maximumf>, %16, %cst_7 [2] : vector<2x8x8xf32> to vector<2x8xf32>
    %18 = vector.shape_cast %17 : vector<2x8xf32> to vector<2x8x1xf32>
    %19 = vector.broadcast %18 : vector<2x8x1xf32> to vector<2x8x8xf32>
    %20 = arith.subf %16, %19 : vector<2x8x8xf32>
    %21 = math.exp %20 : vector<2x8x8xf32>
    %cst_8 = arith.constant dense<0.000000e+00> : vector<2x8xf32>
    %22 = vector.multi_reduction <add>, %21, %cst_8 [2] : vector<2x8x8xf32> to vector<2x8xf32>
    %23 = vector.shape_cast %22 : vector<2x8xf32> to vector<2x8x1xf32>
    %24 = tpu.reciprocal %23 {approx = true} : vector<2x8x1xf32> -> vector<2x8x1xf32>
    %25 = vector.broadcast %24 : vector<2x8x1xf32> to vector<2x8x8xf32>
    %26 = arith.mulf %21, %25 : vector<2x8x8xf32>
    "tpu.trace_start"() <{level = 10 : i32, message = "bst,btd->bsd"}> : () -> ()
    %cst_9 = arith.constant dense<0.000000e+00> : vector<2x8x8xf32>
    %27 = tpu.matmul %26, %15, %cst_9 {dimension_numbers = #tpu.dot_dimension_numbers<[2], [1], [1], [2], [0, 0, 0, 1, 1, 2], [0], [0]>} : vector<2x8x8xf32>, vector<2x8x8xf32>, vector<2x8x8xf32> -> vector<2x8x8xf32>
    "tpu.trace_stop"() : () -> ()
    %28 = vector.extract_strided_slice %8 {offsets = [0, 0, 8], sizes = [2, 8, 8], strides = [1, 1, 1]} : vector<2x8x32xf32> to vector<2x8x8xf32>
    %29 = vector.extract_strided_slice %10 {offsets = [0, 0, 8], sizes = [2, 8, 8], strides = [1, 1, 1]} : vector<2x8x32xf32> to vector<2x8x8xf32>
    %30 = vector.extract_strided_slice %12 {offsets = [0, 0, 8], sizes = [2, 8, 8], strides = [1, 1, 1]} : vector<2x8x32xf32> to vector<2x8x8xf32>
    "tpu.trace_start"() <{level = 10 : i32, message = "bsd,btd->bst"}> : () -> ()
    %cst_10 = arith.constant dense<0.000000e+00> : vector<2x8x8xf32>
    %31 = tpu.matmul %28, %29, %cst_10 {dimension_numbers = #tpu.dot_dimension_numbers<[2], [2], [1], [1], [0, 0, 0, 1, 1, 1], [0], [0]>} : vector<2x8x8xf32>, vector<2x8x8xf32>, vector<2x8x8xf32> -> vector<2x8x8xf32>
    "tpu.trace_stop"() : () -> ()
    %cst_11 = arith.constant dense<0xFF800000> : vector<2x8xf32>
    %32 = vector.multi_reduction <maximumf>, %31, %cst_11 [2] : vector<2x8x8xf32> to vector<2x8xf32>
    %33 = vector.shape_cast %32 : vector<2x8xf32> to vector<2x8x1xf32>
    %34 = vector.broadcast %33 : vector<2x8x1xf32> to vector<2x8x8xf32>
    %35 = arith.subf %31, %34 : vector<2x8x8xf32>
    %36 = math.exp %35 : vector<2x8x8xf32>
    %cst_12 = arith.constant dense<0.000000e+00> : vector<2x8xf32>
    %37 = vector.multi_reduction <add>, %36, %cst_12 [2] : vector<2x8x8xf32> to vector<2x8xf32>
    %38 = vector.shape_cast %37 : vector<2x8xf32> to vector<2x8x1xf32>
    %39 = tpu.reciprocal %38 {approx = true} : vector<2x8x1xf32> -> vector<2x8x1xf32>
    %40 = vector.broadcast %39 : vector<2x8x1xf32> to vector<2x8x8xf32>
    %41 = arith.mulf %36, %40 : vector<2x8x8xf32>
    "tpu.trace_start"() <{level = 10 : i32, message = "bst,btd->bsd"}> : () -> ()
    %cst_13 = arith.constant dense<0.000000e+00> : vector<2x8x8xf32>
    %42 = tpu.matmul %41, %30, %cst_13 {dimension_numbers = #tpu.dot_dimension_numbers<[2], [1], [1], [2], [0, 0, 0, 1, 1, 2], [0], [0]>} : vector<2x8x8xf32>, vector<2x8x8xf32>, vector<2x8x8xf32> -> vector<2x8x8xf32>
    "tpu.trace_stop"() : () -> ()
    %43 = vector.extract_strided_slice %8 {offsets = [0, 0, 16], sizes = [2, 8, 8], strides = [1, 1, 1]} : vector<2x8x32xf32> to vector<2x8x8xf32>
    %44 = vector.extract_strided_slice %10 {offsets = [0, 0, 16], sizes = [2, 8, 8], strides = [1, 1, 1]} : vector<2x8x32xf32> to vector<2x8x8xf32>
    %45 = vector.extract_strided_slice %12 {offsets = [0, 0, 16], sizes = [2, 8, 8], strides = [1, 1, 1]} : vector<2x8x32xf32> to vector<2x8x8xf32>
    "tpu.trace_start"() <{level = 10 : i32, message = "bsd,btd->bst"}> : () -> ()
    %cst_14 = arith.constant dense<0.000000e+00> : vector<2x8x8xf32>
    %46 = tpu.matmul %43, %44, %cst_14 {dimension_numbers = #tpu.dot_dimension_numbers<[2], [2], [1], [1], [0, 0, 0, 1, 1, 1], [0], [0]>} : vector<2x8x8xf32>, vector<2x8x8xf32>, vector<2x8x8xf32> -> vector<2x8x8xf32>
    "tpu.trace_stop"() : () -> ()
    %cst_15 = arith.constant dense<0xFF800000> : vector<2x8xf32>
    %47 = vector.multi_reduction <maximumf>, %46, %cst_15 [2] : vector<2x8x8xf32> to vector<2x8xf32>
    %48 = vector.shape_cast %47 : vector<2x8xf32> to vector<2x8x1xf32>
    %49 = vector.broadcast %48 : vector<2x8x1xf32> to vector<2x8x8xf32>
    %50 = arith.subf %46, %49 : vector<2x8x8xf32>
    %51 = math.exp %50 : vector<2x8x8xf32>
    %cst_16 = arith.constant dense<0.000000e+00> : vector<2x8xf32>
    %52 = vector.multi_reduction <add>, %51, %cst_16 [2] : vector<2x8x8xf32> to vector<2x8xf32>
    %53 = vector.shape_cast %52 : vector<2x8xf32> to vector<2x8x1xf32>
    %54 = tpu.reciprocal %53 {approx = true} : vector<2x8x1xf32> -> vector<2x8x1xf32>
    %55 = vector.broadcast %54 : vector<2x8x1xf32> to vector<2x8x8xf32>
    %56 = arith.mulf %51, %55 : vector<2x8x8xf32>
    "tpu.trace_start"() <{level = 10 : i32, message = "bst,btd->bsd"}> : () -> ()
    %cst_17 = arith.constant dense<0.000000e+00> : vector<2x8x8xf32>
    %57 = tpu.matmul %56, %45, %cst_17 {dimension_numbers = #tpu.dot_dimension_numbers<[2], [1], [1], [2], [0, 0, 0, 1, 1, 2], [0], [0]>} : vector<2x8x8xf32>, vector<2x8x8xf32>, vector<2x8x8xf32> -> vector<2x8x8xf32>
    "tpu.trace_stop"() : () -> ()
    %58 = vector.extract_strided_slice %8 {offsets = [0, 0, 24], sizes = [2, 8, 8], strides = [1, 1, 1]} : vector<2x8x32xf32> to vector<2x8x8xf32>
    %59 = vector.extract_strided_slice %10 {offsets = [0, 0, 24], sizes = [2, 8, 8], strides = [1, 1, 1]} : vector<2x8x32xf32> to vector<2x8x8xf32>
    %60 = vector.extract_strided_slice %12 {offsets = [0, 0, 24], sizes = [2, 8, 8], strides = [1, 1, 1]} : vector<2x8x32xf32> to vector<2x8x8xf32>
    "tpu.trace_start"() <{level = 10 : i32, message = "bsd,btd->bst"}> : () -> ()
    %cst_18 = arith.constant dense<0.000000e+00> : vector<2x8x8xf32>
    %61 = tpu.matmul %58, %59, %cst_18 {dimension_numbers = #tpu.dot_dimension_numbers<[2], [2], [1], [1], [0, 0, 0, 1, 1, 1], [0], [0]>} : vector<2x8x8xf32>, vector<2x8x8xf32>, vector<2x8x8xf32> -> vector<2x8x8xf32>
    "tpu.trace_stop"() : () -> ()
    %cst_19 = arith.constant dense<0xFF800000> : vector<2x8xf32>
    %62 = vector.multi_reduction <maximumf>, %61, %cst_19 [2] : vector<2x8x8xf32> to vector<2x8xf32>
    %63 = vector.shape_cast %62 : vector<2x8xf32> to vector<2x8x1xf32>
    %64 = vector.broadcast %63 : vector<2x8x1xf32> to vector<2x8x8xf32>
    %65 = arith.subf %61, %64 : vector<2x8x8xf32>
    %66 = math.exp %65 : vector<2x8x8xf32>
    %cst_20 = arith.constant dense<0.000000e+00> : vector<2x8xf32>
    %67 = vector.multi_reduction <add>, %66, %cst_20 [2] : vector<2x8x8xf32> to vector<2x8xf32>
    %68 = vector.shape_cast %67 : vector<2x8xf32> to vector<2x8x1xf32>
    %69 = tpu.reciprocal %68 {approx = true} : vector<2x8x1xf32> -> vector<2x8x1xf32>
    %70 = vector.broadcast %69 : vector<2x8x1xf32> to vector<2x8x8xf32>
    %71 = arith.mulf %66, %70 : vector<2x8x8xf32>
    "tpu.trace_start"() <{level = 10 : i32, message = "bst,btd->bsd"}> : () -> ()
    %cst_21 = arith.constant dense<0.000000e+00> : vector<2x8x8xf32>
    %72 = tpu.matmul %71, %60, %cst_21 {dimension_numbers = #tpu.dot_dimension_numbers<[2], [1], [1], [2], [0, 0, 0, 1, 1, 2], [0], [0]>} : vector<2x8x8xf32>, vector<2x8x8xf32>, vector<2x8x8xf32> -> vector<2x8x8xf32>
    "tpu.trace_stop"() : () -> ()
    %73 = tpu.concatenate %27, %42, %57, %72 in 2 : vector<2x8x8xf32>, vector<2x8x8xf32>, vector<2x8x8xf32>, vector<2x8x8xf32> -> vector<2x8x32xf32>
    %74 = vector.shape_cast %73 : vector<2x8x32xf32> to vector<16x32xf32>
    %c0_22 = arith.constant 0 : index
    %c0_23 = arith.constant 0 : index
    %75 = vector.load %arg4[%c0_22, %c0_23] : memref<32x32xf32, #tpu.memory_space<vmem>>, vector<32x32xf32>
    %cst_24 = arith.constant dense<0.000000e+00> : vector<16x32xf32>
    %76 = tpu.matmul %74, %75, %cst_24 {dimension_numbers = #tpu.dot_dimension_numbers<[1], [0], [0], [1], [0, 0, 1, 1], [], []>} : vector<16x32xf32>, vector<32x32xf32>, vector<16x32xf32> -> vector<16x32xf32>
    %c0_25 = arith.constant 0 : index
    %c0_26 = arith.constant 0 : index
    %77 = vector.load %arg5[%c0_25, %c0_26] : memref<1x32xf32, #tpu.memory_space<vmem>>, vector<1x32xf32>
    %78 = vector.broadcast %77 : vector<1x32xf32> to vector<16x32xf32>
    %79 = arith.addf %76, %78 : vector<16x32xf32>
    %c0_27 = arith.constant 0 : index
    %c0_28 = arith.constant 0 : index
    %80 = vector.load %arg6[%c0_27, %c0_28] : memref<32x32xf32, #tpu.memory_space<vmem>>, vector<32x32xf32>
    %cst_29 = arith.constant dense<0.000000e+00> : vector<16x32xf32>
    %81 = tpu.matmul %79, %80, %cst_29 {dimension_numbers = #tpu.dot_dimension_numbers<[1], [0], [0], [1], [0, 0, 1, 1], [], []>} : vector<16x32xf32>, vector<32x32xf32>, vector<16x32xf32> -> vector<16x32xf32>
    %c0_30 = arith.constant 0 : index
    %c0_31 = arith.constant 0 : index
    %82 = vector.load %arg7[%c0_30, %c0_31] : memref<1x32xf32, #tpu.memory_space<vmem>>, vector<1x32xf32>
    %83 = vector.broadcast %82 : vector<1x32xf32> to vector<16x32xf32>
    %84 = arith.addf %81, %83 : vector<16x32xf32>
    %85 = math.tanh %84 : vector<16x32xf32>
    %86 = vector.shape_cast %85 : vector<16x32xf32> to vector<2x8x32xf32>
    %c0_32 = arith.constant 0 : index
    %c0_33 = arith.constant 0 : index
    %87 = vector.load %arg8[%c0_32, %c0_33] : memref<1x32xf32, #tpu.memory_space<vmem>>, vector<1x32xf32>
    %88 = vector.shape_cast %87 : vector<1x32xf32> to vector<1x1x32xf32>
    %89 = vector.broadcast %88 : vector<1x1x32xf32> to vector<2x8x32xf32>
    %90 = arith.mulf %86, %89 : vector<2x8x32xf32>
    %cst_34 = arith.constant dense<0.000000e+00> : vector<2x8xf32>
    %91 = vector.multi_reduction <add>, %90, %cst_34 [2] : vector<2x8x32xf32> to vector<2x8xf32>
    %92 = vector.shape_cast %91 : vector<2x8xf32> to vector<2x8x1xf32>
    %cst_35 = arith.constant dense<0xFF800000> : vector<2x1xf32>
    %93 = vector.multi_reduction <maximumf>, %92, %cst_35 [1] : vector<2x8x1xf32> to vector<2x1xf32>
    %94 = vector.shape_cast %93 : vector<2x1xf32> to vector<2x1x1xf32>
    %95 = vector.broadcast %94 : vector<2x1x1xf32> to vector<2x8x1xf32>
    %96 = arith.subf %92, %95 : vector<2x8x1xf32>
    %97 = math.exp %96 : vector<2x8x1xf32>
    %cst_36 = arith.constant dense<0.000000e+00> : vector<2x1xf32>
    %98 = vector.multi_reduction <add>, %97, %cst_36 [1] : vector<2x8x1xf32> to vector<2x1xf32>
    %99 = vector.shape_cast %98 : vector<2x1xf32> to vector<2x1x1xf32>
    %100 = tpu.reciprocal %99 {approx = true} : vector<2x1x1xf32> -> vector<2x1x1xf32>
    %101 = vector.broadcast %100 : vector<2x1x1xf32> to vector<2x8x1xf32>
    %102 = arith.mulf %97, %101 : vector<2x8x1xf32>
    %103 = vector.shape_cast %79 : vector<16x32xf32> to vector<2x8x32xf32>
    %104 = vector.broadcast %102 : vector<2x8x1xf32> to vector<2x8x32xf32>
    %105 = arith.mulf %104, %103 : vector<2x8x32xf32>
    %cst_37 = arith.constant dense<0.000000e+00> : vector<2x32xf32>
    %106 = vector.multi_reduction <add>, %105, %cst_37 [1] : vector<2x8x32xf32> to vector<2x32xf32>
    %c0_38 = arith.constant 0 : index
    %c0_39 = arith.constant 0 : index
    %107 = vector.load %arg9[%c0_38, %c0_39] : memref<2x32xf32, #tpu.memory_space<vmem>>, vector<2x32xf32>
    tpu.vector_store %arg9[%c0_38, %c0_39], %106 {strides = array<i32>} : memref<2x32xf32, #tpu.memory_space<vmem>>, vector<2x32xf32>,
    return
  }
  func.func @transform_0(%arg0: i32) -> (i32, i32, i32) {
    %c0_i32 = arith.constant 0 : i32
    %c0_i32_0 = arith.constant 0 : i32
    %c0_i32_1 = arith.constant 0 : i32
    return %arg0, %c0_i32, %c0_i32_0 : i32, i32, i32
  }
  func.func @transform_1(%arg0: i32) -> (i32, i32) {
    %c0_i32 = arith.constant 0 : i32
    %c0_i32_0 = arith.constant 0 : i32
    %c0_i32_1 = arith.constant 0 : i32
    return %c0_i32, %c0_i32_0 : i32, i32
  }
  func.func @transform_2(%arg0: i32) -> (i32, i32) {
    %c0_i32 = arith.constant 0 : i32
    %c0_i32_0 = arith.constant 0 : i32
    %c0_i32_1 = arith.constant 0 : i32
    return %c0_i32, %c0_i32_0 : i32, i32
  }
  func.func @transform_3(%arg0: i32) -> (i32, i32) {
    %c0_i32 = arith.constant 0 : i32
    %c0_i32_0 = arith.constant 0 : i32
    %c0_i32_1 = arith.constant 0 : i32
    return %c0_i32, %c0_i32_0 : i32, i32
  }
  func.func @transform_4(%arg0: i32) -> (i32, i32) {
    %c0_i32 = arith.constant 0 : i32
    %c0_i32_0 = arith.constant 0 : i32
    %c0_i32_1 = arith.constant 0 : i32
    return %c0_i32, %c0_i32_0 : i32, i32
  }
  func.func @transform_5(%arg0: i32) -> (i32, i32) {
    %c0_i32 = arith.constant 0 : i32
    %c0_i32_0 = arith.constant 0 : i32
    %c0_i32_1 = arith.constant 0 : i32
    return %c0_i32, %c0_i32_0 : i32, i32
  }
  func.func @transform_6(%arg0: i32) -> (i32, i32) {
    %c0_i32 = arith.constant 0 : i32
    %c0_i32_0 = arith.constant 0 : i32
    %c0_i32_1 = arith.constant 0 : i32
    return %c0_i32, %c0_i32_0 : i32, i32
  }
  func.func @transform_7(%arg0: i32) -> (i32, i32) {
    %c0_i32 = arith.constant 0 : i32
    %c0_i32_0 = arith.constant 0 : i32
    %c0_i32_1 = arith.constant 0 : i32
    return %c0_i32, %c0_i32_0 : i32, i32
  }
  func.func @transform_8(%arg0: i32) -> (i32, i32) {
    %c0_i32 = arith.constant 0 : i32
    %c0_i32_0 = arith.constant 0 : i32
    return %arg0, %c0_i32 : i32, i32
  }
}

</mosaic_0001>

<llo_original>
// kernel: tpu_custom_call.1
$region0: #{tpu_custom_call.1}
  #allocation0 [shape = 'u32[]', space=smem, size = 0x4, offset = 0x4, fixed_abs, tag = 'smem constant byte address 0x4 - core index']
  #allocation1 [shape = 'u32[144,128]{1,0:T(1,128)}', space=vmem, size = 0x12000, scoped, tag = 'internal scratch']
  %s0 = inlined_call_operand.hbm [shape: f32[2,8,32], index: 0, kind: input, shape index: {}]
  %s1 = inlined_call_operand.hbm [shape: f32[32,96], index: 1, kind: input, shape index: {}]
  %s2 = inlined_call_operand.vmem [shape: f32[1,96], index: 2, kind: input, shape index: {}]
  %s3 = inlined_call_operand.hbm [shape: f32[32,32], index: 3, kind: input, shape index: {}]
  %s4 = inlined_call_operand.vmem [shape: f32[1,32], index: 4, kind: input, shape index: {}]
  %s5 = inlined_call_operand.hbm [shape: f32[32,32], index: 5, kind: input, shape index: {}]
  %s6 = inlined_call_operand.vmem [shape: f32[1,32], index: 6, kind: input, shape index: {}]
  %s7 = inlined_call_operand.vmem [shape: f32[1,32], index: 7, kind: input, shape index: {}]
  %s8 = inlined_call_operand.hbm [shape: f32[2,32], index: 8, kind: output, shape index: {}]
  %s9 = sld [smem:[#allocation0]]
  $region58: #{tpu_custom_call.1} parent=0
    _
  %s11 = ssub.s32 1, %s9
  %s12 = scalar_select 0, %s11, %s9
  $region1: #{tpu_custom_call.1} parent=0
    #allocation2 [shape = 'u8[8192]{0}', space=vmem, size = 0x2000, scoped, tag = 'input window, operand 0, single buffered']
    #allocation3 [shape = 's32[1]{0}', space=sflag, size = 0x4, scoped, tag = 'scoped memory for tpu_custom_call.1']
    #allocation4 [shape = 's32[1]{0}', space=sflag, size = 0x4, scoped, tag = 'scoped memory for tpu_custom_call.1']
    #allocation5 [shape = 'u8[16384]{0}', space=vmem, size = 0x4000, scoped, tag = 'input window, operand 1, single buffered']
    #allocation6 [shape = 's32[1]{0}', space=sflag, size = 0x4, scoped, tag = 'scoped memory for tpu_custom_call.1']
    #allocation7 [shape = 'u8[16384]{0}', space=vmem, size = 0x4000, scoped, tag = 'input window, operand 3, single buffered']
    #allocation8 [shape = 'u8[16384]{0}', space=vmem, size = 0x4000, scoped, tag = 'input window, operand 5, single buffered']
    #allocation9 [shape = 's32[1]{0}', space=sflag, size = 0x4, scoped, tag = 'scoped memory for tpu_custom_call.1']
    #allocation10 [shape = 'u8[1024]{0}', space=vmem, size = 0x400, scoped, tag = 'output window, operand 0, single buffered']
    %13 = vsyncpa [#allocation3], 0
    %14 = vsyncpa [#allocation6], 0
    %15 = vsyncpa [#allocation9], 0
    %16 = vsyncpa [#allocation4], 0
    // Predicated region
    $region2: #{tpu_custom_call.1} parent=1 // pred_check
      _
    $region3: #{tpu_custom_call.1} parent=1 // pred_check_branch
      %18 = sbr.rel (0) target = $region5
    $region4: #{tpu_custom_call.1} parent=1 // pred_region
      %s20 = ssub.s32 256, 256
      %21 = vsyncadd [#allocation3], %s20
      %s22 = sshll.u32 [#allocation2], 4
      %s23 = int_to_ptr.vmem [resolvable:$true] %s22
      %28 = dma.hbm_to_vmem [thread:$0]  %s0, 256, %s23, [#allocation3], 128, 128, 8
    $region5: #{tpu_custom_call.1} parent=1 // pred_fallthru
      _
    // Predicated region
    $region6: #{tpu_custom_call.1} parent=1 // pred_check
      _
    $region7: #{tpu_custom_call.1} parent=1 // pred_check_branch
      %30 = sbr.rel (0) target = $region9
    $region8: #{tpu_custom_call.1} parent=1 // pred_region
      %s32 = ssub.s32 512, 512
      %33 = vsyncadd [#allocation6], %s32
      %s34 = sshll.u32 [#allocation5], 4
      %s35 = int_to_ptr.vmem [resolvable:$true] %s34
      %40 = dma.hbm_to_vmem [thread:$0]  %s1, 512, %s35, [#allocation6], 128, 128, 8
    $region9: #{tpu_custom_call.1} parent=1 // pred_fallthru
      _
    // Predicated region
    $region10: #{tpu_custom_call.1} parent=1 // pred_check
      _
    $region11: #{tpu_custom_call.1} parent=1 // pred_check_branch
      %42 = sbr.rel (0) target = $region13
    $region12: #{tpu_custom_call.1} parent=1 // pred_region
      _
    $region13: #{tpu_custom_call.1} parent=1 // pred_fallthru
      _
    // Predicated region
    $region14: #{tpu_custom_call.1} parent=1 // pred_check
      _
    $region15: #{tpu_custom_call.1} parent=1 // pred_check_branch
      %44 = sbr.rel (0) target = $region17
    $region16: #{tpu_custom_call.1} parent=1 // pred_region
      %s46 = ssub.s32 512, 512
      %47 = vsyncadd [#allocation6], %s46
      %s48 = sshll.u32 [#allocation7], 4
      %s49 = int_to_ptr.vmem [resolvable:$true] %s48
      %54 = dma.hbm_to_vmem [thread:$0]  %s3, 512, %s49, [#allocation6], 128, 128, 8
    $region17: #{tpu_custom_call.1} parent=1 // pred_fallthru
      _
    // Predicated region
    $region18: #{tpu_custom_call.1} parent=1 // pred_check
      _
    $region19: #{tpu_custom_call.1} parent=1 // pred_check_branch
      %56 = sbr.rel (0) target = $region21
    $region20: #{tpu_custom_call.1} parent=1 // pred_region
      _
    $region21: #{tpu_custom_call.1} parent=1 // pred_fallthru
      _
    // Predicated region
    $region22: #{tpu_custom_call.1} parent=1 // pred_check
      _
    $region23: #{tpu_custom_call.1} parent=1 // pred_check_branch
      %58 = sbr.rel (0) target = $region25
    $region24: #{tpu_custom_call.1} parent=1 // pred_region
      %s60 = ssub.s32 512, 512
      %61 = vsyncadd [#allocation9], %s60
      %s62 = sshll.u32 [#allocation8], 4
      %s63 = int_to_ptr.vmem [resolvable:$true] %s62
      %68 = dma.hbm_to_vmem [thread:$0]  %s5, 512, %s63, [#allocation9], 128, 128, 8
    $region25: #{tpu_custom_call.1} parent=1 // pred_fallthru
      _
    // Predicated region
    $region26: #{tpu_custom_call.1} parent=1 // pred_check
      _
    $region27: #{tpu_custom_call.1} parent=1 // pred_check_branch
      %70 = sbr.rel (0) target = $region29
    $region28: #{tpu_custom_call.1} parent=1 // pred_region
      _
    $region29: #{tpu_custom_call.1} parent=1 // pred_fallthru
      _
    // Predicated region
    $region30: #{tpu_custom_call.1} parent=1 // pred_check
      _
    $region31: #{tpu_custom_call.1} parent=1 // pred_check_branch
      %72 = sbr.rel (0) target = $region33
    $region32: #{tpu_custom_call.1} parent=1 // pred_region
      _
    $region33: #{tpu_custom_call.1} parent=1 // pred_fallthru
      _
    // Predicated region
    $region34: #{tpu_custom_call.1} parent=1 // pred_check
      _
    $region35: #{tpu_custom_call.1} parent=1 // pred_check_branch
      %74 = sbr.rel (0) target = $region37
    $region36: #{tpu_custom_call.1} parent=1 // pred_region
      %75 = dma.done [#allocation3], 256
    $region37: #{tpu_custom_call.1} parent=1 // pred_fallthru
      _
    // Predicated region
    $region38: #{tpu_custom_call.1} parent=1 // pred_check
      _
    $region39: #{tpu_custom_call.1} parent=1 // pred_check_branch
      %77 = sbr.rel (0) target = $region41
    $region40: #{tpu_custom_call.1} parent=1 // pred_region
      %78 = dma.done [#allocation6], 512
    $region41: #{tpu_custom_call.1} parent=1 // pred_fallthru
      _
    // Predicated region
    $region42: #{tpu_custom_call.1} parent=1 // pred_check
      _
    $region43: #{tpu_custom_call.1} parent=1 // pred_check_branch
      %80 = sbr.rel (0) target = $region45
    $region44: #{tpu_custom_call.1} parent=1 // pred_region
      %81 = dma.done [#allocation6], 512
    $region45: #{tpu_custom_call.1} parent=1 // pred_fallthru
      _
    // Predicated region
    $region46: #{tpu_custom_call.1} parent=1 // pred_check
      _
    $region47: #{tpu_custom_call.1} parent=1 // pred_check_branch
      %83 = sbr.rel (0) target = $region49
    $region48: #{tpu_custom_call.1} parent=1 // pred_region
      %84 = dma.done [#allocation9], 512
    $region49: #{tpu_custom_call.1} parent=1 // pred_fallthru
      _
    %v85 = vld [vmem:[#allocation2] sm:$0xff]
    %v86 = vld [vmem:[#allocation2 + $0x8] sm:$0xff]
    %v87 = vld [vmem:[#allocation5] sm:$0xff]
    %v88 = vld [vmem:[#allocation5 + $0x8] sm:$0xff]
    %v89 = vld [vmem:[#allocation5 + $0x10] sm:$0xff]
    %v90 = vld [vmem:[#allocation5 + $0x18] sm:$0xff]
    %v91 = vld [vmem:[%s2] sm:$0x1]
    %v93 = vlaneseq
    %v94 = vshrl.u32 %v93, 7
    %v95 = vsub.s32 0, %v94
    %v96 = vrot.slane %v91, %v95
    %vm98 = vcmask 261120
    %v100 = vsel %vm98, %v85, 0
    %v103 = vsel %vm98, %v86, 0
    %105 = vmatprep.subr.mxu0 0.0
    %106 = vmatpush1.msra.mxu0 %v87
    %107 = vmatprep.subr.mxu0 0.0
    %108 = vmatpush1.msra.mxu0 %v88
    %109 = vmatprep.subr.mxu0 0.0
    %110 = vmatpush1.msra.mxu0 %v89
    %111 = vmatprep.subr.mxu0 0.0
    %112 = vmatpush1.msra.mxu0 %v90
    %113 = vmatprep.subr.mxu0 0.0
    %114 = vmatpush1.msra.mxu0 0.0
    %115 = vmatprep.subr.mxu0 0.0
    %116 = vmatpush1.msra.mxu0 0.0
    %117 = vmatprep.subr.mxu0 0.0
    %118 = vmatpush1.msra.mxu0 0.0
    %119 = vmatprep.subr.mxu0 0.0
    %120 = vmatpush1.msra.mxu0 0.0
    %121 = vmatprep.subr.mxu0 0.0
    %122 = vmatpush1.msra.mxu0 0.0
    %123 = vmatprep.subr.mxu0 0.0
    %124 = vmatpush1.msra.mxu0 0.0
    %125 = vmatprep.subr.mxu0 0.0
    %126 = vmatpush1.msra.mxu0 0.0
    %127 = vmatprep.subr.mxu0 0.0
    %128 = vmatpush1.msra.mxu0 0.0
    %129 = vmatprep.subr.mxu0 0.0
    %130 = vmatpush1.msra.mxu0 0.0
    %131 = vmatprep.subr.mxu0 0.0
    %132 = vmatpush1.msra.mxu0 0.0
    %133 = vmatprep.subr.mxu0 0.0
    %134 = vmatpush1.msra.mxu0 0.0
    %135 = vmatprep.subr.mxu0 0.0
    %136 = vmatpush1.msra.mxu0 0.0
    %137 = vmatprep.subr.mxu0 0.0
    %138 = vmatpush1.msra.mxu0 0.0
    %139 = vmatprep.subr.mxu0 0.0
    %140 = vmatpush1.msra.mxu0 0.0
    %141 = vmatprep.subr.mxu0 0.0
    %142 = vmatpush1.msra.mxu0 0.0
    %143 = vmatprep.subr.mxu0 0.0
    %144 = vmatpush1.msra.mxu0 0.0
    %145 = vmatprep.subr.mxu0 0.0
    %146 = vmatpush1.msra.mxu0 0.0
    %147 = vmatprep.subr.mxu0 0.0
    %148 = vmatpush1.msra.mxu0 0.0
    %149 = vmatprep.subr.mxu0 0.0
    %150 = vmatpush1.msra.mxu0 0.0
    %151 = vmatprep.subr.mxu0 0.0
    %152 = vmatpush1.msra.mxu0 0.0
    %153 = vmatprep.subr.mxu0 0.0
    %154 = vmatpush1.msra.mxu0 0.0
    %155 = vmatprep.subr.mxu0 0.0
    %156 = vmatpush1.msra.mxu0 0.0
    %157 = vmatprep.subr.mxu0 0.0
    %158 = vmatpush1.msra.mxu0 0.0
    %159 = vmatprep.subr.mxu0 0.0
    %160 = vmatpush1.msra.mxu0 0.0
    %161 = vmatprep.subr.mxu0 0.0
    %162 = vmatpush1.msra.mxu0 0.0
    %163 = vmatprep.subr.mxu0 0.0
    %164 = vmatpush1.msra.mxu0 0.0
    %165 = vmatprep.subr.mxu0 0.0
    %166 = vmatpush1.msra.mxu0 0.0
    %167 = vmatprep.subr.mxu0 0.0
    %168 = vmatpush1.msra.mxu0 0.0
    %169 = vmatprep.mubr.f32.mxu0 0.0
    %170 = vmatmul.mubr.f32.gmra.mrb[0].mxu0 %v100
    %v171 = vpop.f32.mrb[0].mxu0
    %v172 = vadd.f32 %v96, %v171
    %v173 = vpop.f32.mrb[0].mxu0
    %174 = vmatprep.mubr.f32.mxu0 0.0
    %175 = vmatmul.mubr.f32.gmra.mrb[0].mxu0 %v103
    %v176 = vpop.f32.mrb[0].mxu0
    %v177 = vadd.f32 %v96, %v176
    %v178 = vpop.f32.mrb[0].mxu0
    %179 = vdwg.mxu0
    %181 = vrot.lane.b32.xlu0 %v172, 96
    %v182 = vpop.permute.xlu0 %181
    %vm183 = vcmask 64512
    %v184 = vsel %vm183, %v172, 0
    %v186 = vsel %vm183, %v182, 0
    %188 = vmatprep.subr.mxu0 0.0
    %189 = vmatpush1.xpose.msra.mxu0 %v186
    %190 = vmatprep.subr.mxu0 0.0
    %191 = vmatpush1.xpose.msra.mxu0 0.0
    %192 = vmatprep.subr.mxu0 0.0
    %193 = vmatpush1.xpose.msra.mxu0 0.0
    %194 = vmatprep.subr.mxu0 0.0
    %195 = vmatpush1.xpose.msra.mxu0 0.0
    %196 = vmatprep.subr.mxu0 0.0
    %197 = vmatpush1.xpose.msra.mxu0 0.0
    %198 = vmatprep.subr.mxu0 0.0
    %199 = vmatpush1.xpose.msra.mxu0 0.0
    %200 = vmatprep.subr.mxu0 0.0
    %201 = vmatpush1.xpose.msra.mxu0 0.0
    %202 = vmatprep.subr.mxu0 0.0
    %203 = vmatpush1.xpose.msra.mxu0 0.0
    %204 = vmatprep.subr.mxu0 0.0
    %205 = vmatpush1.xpose.msra.mxu0 0.0
    %206 = vmatprep.subr.mxu0 0.0
    %207 = vmatpush1.xpose.msra.mxu0 0.0
    %208 = vmatprep.subr.mxu0 0.0
    %209 = vmatpush1.xpose.msra.mxu0 0.0
    %210 = vmatprep.subr.mxu0 0.0
    %211 = vmatpush1.xpose.msra.mxu0 0.0
    %212 = vmatprep.subr.mxu0 0.0
    %213 = vmatpush1.xpose.msra.mxu0 0.0
    %214 = vmatprep.subr.mxu0 0.0
    %215 = vmatpush1.xpose.msra.mxu0 0.0
    %216 = vmatprep.subr.mxu0 0.0
    %217 = vmatpush1.xpose.msra.mxu0 0.0
    %218 = vmatprep.subr.mxu0 0.0
    %219 = vmatpush1.xpose.msra.mxu0 0.0
    %220 = vmatprep.subr.mxu0 0.0
    %221 = vmatpush1.xpose.msra.mxu0 0.0
    %222 = vmatprep.subr.mxu0 0.0
    %223 = vmatpush1.xpose.msra.mxu0 0.0
    %224 = vmatprep.subr.mxu0 0.0
    %225 = vmatpush1.xpose.msra.mxu0 0.0
    %226 = vmatprep.subr.mxu0 0.0
    %227 = vmatpush1.xpose.msra.mxu0 0.0
    %228 = vmatprep.subr.mxu0 0.0
    %229 = vmatpush1.xpose.msra.mxu0 0.0
    %230 = vmatprep.subr.mxu0 0.0
    %231 = vmatpush1.xpose.msra.mxu0 0.0
    %232 = vmatprep.subr.mxu0 0.0
    %233 = vmatpush1.xpose.msra.mxu0 0.0
    %234 = vmatprep.subr.mxu0 0.0
    %235 = vmatpush1.xpose.msra.mxu0 0.0
    %236 = vmatprep.subr.mxu0 0.0
    %237 = vmatpush1.xpose.msra.mxu0 0.0
    %238 = vmatprep.subr.mxu0 0.0
    %239 = vmatpush1.xpose.msra.mxu0 0.0
    %240 = vmatprep.subr.mxu0 0.0
    %241 = vmatpush1.xpose.msra.mxu0 0.0
    %242 = vmatprep.subr.mxu0 0.0
    %243 = vmatpush1.xpose.msra.mxu0 0.0
    %244 = vmatprep.subr.mxu0 0.0
    %245 = vmatpush1.xpose.msra.mxu0 0.0
    %246 = vmatprep.subr.mxu0 0.0
    %247 = vmatpush1.xpose.msra.mxu0 0.0
    %248 = vmatprep.subr.mxu0 0.0
    %249 = vmatpush1.xpose.msra.mxu0 0.0
    %250 = vmatprep.subr.mxu0 0.0
    %251 = vmatpush1.xpose.msra.mxu0 0.0
    %252 = vmatprep.mubr.f32.mxu0 0.0
    %253 = vmatmul.mubr.f32.gmra.mrb[0].mxu0 %v184
    %v254 = vpop.f32.mrb[0].mxu0
    %v255 = vadd.f32 0.0, %v254
    %v256 = vpop.f32.mrb[0].mxu0
    %257 = vdwg.mxu0
    %259 = vrot.lane.b32.xlu0 %v177, 96
    %v260 = vpop.permute.xlu0 %259
    %v261 = vsel %vm183, %v177, 0
    %v263 = vsel %vm183, %v260, 0
    %265 = vmatprep.subr.mxu0 0.0
    %266 = vmatpush1.xpose.msra.mxu0 %v263
    %267 = vmatprep.subr.mxu0 0.0
    %268 = vmatpush1.xpose.msra.mxu0 0.0
    %269 = vmatprep.subr.mxu0 0.0
    %270 = vmatpush1.xpose.msra.mxu0 0.0
    %271 = vmatprep.subr.mxu0 0.0
    %272 = vmatpush1.xpose.msra.mxu0 0.0
    %273 = vmatprep.subr.mxu0 0.0
    %274 = vmatpush1.xpose.msra.mxu0 0.0
    %275 = vmatprep.subr.mxu0 0.0
    %276 = vmatpush1.xpose.msra.mxu0 0.0
    %277 = vmatprep.subr.mxu0 0.0
    %278 = vmatpush1.xpose.msra.mxu0 0.0
    %279 = vmatprep.subr.mxu0 0.0
    %280 = vmatpush1.xpose.msra.mxu0 0.0
    %281 = vmatprep.subr.mxu0 0.0
    %282 = vmatpush1.xpose.msra.mxu0 0.0
    %283 = vmatprep.subr.mxu0 0.0
    %284 = vmatpush1.xpose.msra.mxu0 0.0
    %285 = vmatprep.subr.mxu0 0.0
    %286 = vmatpush1.xpose.msra.mxu0 0.0
    %287 = vmatprep.subr.mxu0 0.0
    %288 = vmatpush1.xpose.msra.mxu0 0.0
    %289 = vmatprep.subr.mxu0 0.0
    %290 = vmatpush1.xpose.msra.mxu0 0.0
    %291 = vmatprep.subr.mxu0 0.0
    %292 = vmatpush1.xpose.msra.mxu0 0.0
    %293 = vmatprep.subr.mxu0 0.0
    %294 = vmatpush1.xpose.msra.mxu0 0.0
    %295 = vmatprep.subr.mxu0 0.0
    %296 = vmatpush1.xpose.msra.mxu0 0.0
    %297 = vmatprep.subr.mxu0 0.0
    %298 = vmatpush1.xpose.msra.mxu0 0.0
    %299 = vmatprep.subr.mxu0 0.0
    %300 = vmatpush1.xpose.msra.mxu0 0.0
    %301 = vmatprep.subr.mxu0 0.0
    %302 = vmatpush1.xpose.msra.mxu0 0.0
    %303 = vmatprep.subr.mxu0 0.0
    %304 = vmatpush1.xpose.msra.mxu0 0.0
    %305 = vmatprep.subr.mxu0 0.0
    %306 = vmatpush1.xpose.msra.mxu0 0.0
    %307 = vmatprep.subr.mxu0 0.0
    %308 = vmatpush1.xpose.msra.mxu0 0.0
    %309 = vmatprep.subr.mxu0 0.0
    %310 = vmatpush1.xpose.msra.mxu0 0.0
    %311 = vmatprep.subr.mxu0 0.0
    %312 = vmatpush1.xpose.msra.mxu0 0.0
    %313 = vmatprep.subr.mxu0 0.0
    %314 = vmatpush1.xpose.msra.mxu0 0.0
    %315 = vmatprep.subr.mxu0 0.0
    %316 = vmatpush1.xpose.msra.mxu0 0.0
    %317 = vmatprep.subr.mxu0 0.0
    %318 = vmatpush1.xpose.msra.mxu0 0.0
    %319 = vmatprep.subr.mxu0 0.0
    %320 = vmatpush1.xpose.msra.mxu0 0.0
    %321 = vmatprep.subr.mxu0 0.0
    %322 = vmatpush1.xpose.msra.mxu0 0.0
    %323 = vmatprep.subr.mxu0 0.0
    %324 = vmatpush1.xpose.msra.mxu0 0.0
    %325 = vmatprep.subr.mxu0 0.0
    %326 = vmatpush1.xpose.msra.mxu0 0.0
    %327 = vmatprep.subr.mxu0 0.0
    %328 = vmatpush1.xpose.msra.mxu0 0.0
    %329 = vmatprep.mubr.f32.mxu0 0.0
    %330 = vmatmul.mubr.f32.gmra.mrb[0].mxu0 %v261
    %v331 = vpop.f32.mrb[0].mxu0
    %v332 = vadd.f32 0.0, %v331
    %v333 = vpop.f32.mrb[0].mxu0
    %334 = vdwg.mxu0
    %v335 = vsel %vm183, %v255, -inf
    %336 = vmax.xlane.f32.xlu0 %v335
    %v337 = vpop.xlane.xlu0 %336
    %v338 = vsel %vm183, %v332, -inf
    %339 = vmax.xlane.f32.xlu0 %v338
    %v340 = vpop.xlane.xlu0 %339
    %v341 = vsub.f32 %v255, %v337
    %v342 = vsub.f32 %v332, %v340
    %v343 = vmul.f32 %v341, 1.442695
    %v344 = vpow.pop %v343
    %v345 = vmul.f32 %v342, 1.442695
    %v346 = vpow.pop %v345
    %v347 = vsel %vm183, %v344, 0.0
    %348 = vadd.xlane.f32.xlu0 %v347
    %v349 = vpop.xlane.xlu0 %348
    %v350 = vsel %vm183, %v346, 0.0
    %351 = vadd.xlane.f32.xlu0 %v350
    %v352 = vpop.xlane.xlu0 %351
    %v353 = vrcp.pop %v349
    %v354 = vrcp.pop %v352
    %v355 = vmul.f32 %v344, %v353
    %v356 = vmul.f32 %v346, %v354
    %357 = vrot.lane.b32.xlu0 %v172, 64
    %v358 = vpop.permute.xlu0 %357
    %v361 = vsel %vm183, %v355, 0
    %363 = vmatprep.subr.mxu0 0.0
    %364 = vmatpush1.msra.mxu0 %v358
    %365 = vmatprep.subr.mxu0 0.0
    %366 = vmatpush1.msra.mxu0 0.0
    %367 = vmatprep.subr.mxu0 0.0
    %368 = vmatpush1.msra.mxu0 0.0
    %369 = vmatprep.subr.mxu0 0.0
    %370 = vmatpush1.msra.mxu0 0.0
    %371 = vmatprep.subr.mxu0 0.0
    %372 = vmatpush1.msra.mxu0 0.0
    %373 = vmatprep.subr.mxu0 0.0
    %374 = vmatpush1.msra.mxu0 0.0
    %375 = vmatprep.subr.mxu0 0.0
    %376 = vmatpush1.msra.mxu0 0.0
    %377 = vmatprep.subr.mxu0 0.0
    %378 = vmatpush1.msra.mxu0 0.0
    %379 = vmatprep.subr.mxu0 0.0
    %380 = vmatpush1.msra.mxu0 0.0
    %381 = vmatprep.subr.mxu0 0.0
    %382 = vmatpush1.msra.mxu0 0.0
    %383 = vmatprep.subr.mxu0 0.0
    %384 = vmatpush1.msra.mxu0 0.0
    %385 = vmatprep.subr.mxu0 0.0
    %386 = vmatpush1.msra.mxu0 0.0
    %387 = vmatprep.subr.mxu0 0.0
    %388 = vmatpush1.msra.mxu0 0.0
    %389 = vmatprep.subr.mxu0 0.0
    %390 = vmatpush1.msra.mxu0 0.0
    %391 = vmatprep.subr.mxu0 0.0
    %392 = vmatpush1.msra.mxu0 0.0
    %393 = vmatprep.subr.mxu0 0.0
    %394 = vmatpush1.msra.mxu0 0.0
    %395 = vmatprep.subr.mxu0 0.0
    %396 = vmatpush1.msra.mxu0 0.0
    %397 = vmatprep.subr.mxu0 0.0
    %398 = vmatpush1.msra.mxu0 0.0
    %399 = vmatprep.subr.mxu0 0.0
    %400 = vmatpush1.msra.mxu0 0.0
    %401 = vmatprep.subr.mxu0 0.0
    %402 = vmatpush1.msra.mxu0 0.0
    %403 = vmatprep.subr.mxu0 0.0
    %404 = vmatpush1.msra.mxu0 0.0
    %405 = vmatprep.subr.mxu0 0.0
    %406 = vmatpush1.msra.mxu0 0.0
    %407 = vmatprep.subr.mxu0 0.0
    %408 = vmatpush1.msra.mxu0 0.0
    %409 = vmatprep.subr.mxu0 0.0
    %410 = vmatpush1.msra.mxu0 0.0
    %411 = vmatprep.subr.mxu0 0.0
    %412 = vmatpush1.msra.mxu0 0.0
    %413 = vmatprep.subr.mxu0 0.0
    %414 = vmatpush1.msra.mxu0 0.0
    %415 = vmatprep.subr.mxu0 0.0
    %416 = vmatpush1.msra.mxu0 0.0
    %417 = vmatprep.subr.mxu0 0.0
    %418 = vmatpush1.msra.mxu0 0.0
    %419 = vmatprep.subr.mxu0 0.0
    %420 = vmatpush1.msra.mxu0 0.0
    %421 = vmatprep.subr.mxu0 0.0
    %422 = vmatpush1.msra.mxu0 0.0
    %423 = vmatprep.subr.mxu0 0.0
    %424 = vmatpush1.msra.mxu0 0.0
    %425 = vmatprep.subr.mxu0 0.0
    %426 = vmatpush1.msra.mxu0 0.0
    %427 = vmatprep.mubr.f32.mxu0 0.0
    %428 = vmatmul.mubr.f32.gmra.mrb[0].mxu0 %v361
    %v429 = vpop.f32.mrb[0].mxu0
    %v430 = vadd.f32 0.0, %v429
    %v431 = vpop.f32.mrb[0].mxu0
    %432 = vdwg.mxu0
    %433 = vrot.lane.b32.xlu0 %v177, 64
    %v434 = vpop.permute.xlu0 %433
    %v437 = vsel %vm183, %v356, 0
    %439 = vmatprep.subr.mxu0 0.0
    %440 = vmatpush1.msra.mxu0 %v434
    %441 = vmatprep.subr.mxu0 0.0
    %442 = vmatpush1.msra.mxu0 0.0
    %443 = vmatprep.subr.mxu0 0.0
    %444 = vmatpush1.msra.mxu0 0.0
    %445 = vmatprep.subr.mxu0 0.0
    %446 = vmatpush1.msra.mxu0 0.0
    %447 = vmatprep.subr.mxu0 0.0
    %448 = vmatpush1.msra.mxu0 0.0
    %449 = vmatprep.subr.mxu0 0.0
    %450 = vmatpush1.msra.mxu0 0.0
    %451 = vmatprep.subr.mxu0 0.0
    %452 = vmatpush1.msra.mxu0 0.0
    %453 = vmatprep.subr.mxu0 0.0
    %454 = vmatpush1.msra.mxu0 0.0
    %455 = vmatprep.subr.mxu0 0.0
    %456 = vmatpush1.msra.mxu0 0.0
    %457 = vmatprep.subr.mxu0 0.0
    %458 = vmatpush1.msra.mxu0 0.0
    %459 = vmatprep.subr.mxu0 0.0
    %460 = vmatpush1.msra.mxu0 0.0
    %461 = vmatprep.subr.mxu0 0.0
    %462 = vmatpush1.msra.mxu0 0.0
    %463 = vmatprep.subr.mxu0 0.0
    %464 = vmatpush1.msra.mxu0 0.0
    %465 = vmatprep.subr.mxu0 0.0
    %466 = vmatpush1.msra.mxu0 0.0
    %467 = vmatprep.subr.mxu0 0.0
    %468 = vmatpush1.msra.mxu0 0.0
    %469 = vmatprep.subr.mxu0 0.0
    %470 = vmatpush1.msra.mxu0 0.0
    %471 = vmatprep.subr.mxu0 0.0
    %472 = vmatpush1.msra.mxu0 0.0
    %473 = vmatprep.subr.mxu0 0.0
    %474 = vmatpush1.msra.mxu0 0.0
    %475 = vmatprep.subr.mxu0 0.0
    %476 = vmatpush1.msra.mxu0 0.0
    %477 = vmatprep.subr.mxu0 0.0
    %478 = vmatpush1.msra.mxu0 0.0
    %479 = vmatprep.subr.mxu0 0.0
    %480 = vmatpush1.msra.mxu0 0.0
    %481 = vmatprep.subr.mxu0 0.0
    %482 = vmatpush1.msra.mxu0 0.0
    %483 = vmatprep.subr.mxu0 0.0
    %484 = vmatpush1.msra.mxu0 0.0
    %485 = vmatprep.subr.mxu0 0.0
    %486 = vmatpush1.msra.mxu0 0.0
    %487 = vmatprep.subr.mxu0 0.0
    %488 = vmatpush1.msra.mxu0 0.0
    %489 = vmatprep.subr.mxu0 0.0
    %490 = vmatpush1.msra.mxu0 0.0
    %491 = vmatprep.subr.mxu0 0.0
    %492 = vmatpush1.msra.mxu0 0.0
    %493 = vmatprep.subr.mxu0 0.0
    %494 = vmatpush1.msra.mxu0 0.0
    %495 = vmatprep.subr.mxu0 0.0
    %496 = vmatpush1.msra.mxu0 0.0
    %497 = vmatprep.subr.mxu0 0.0
    %498 = vmatpush1.msra.mxu0 0.0
    %499 = vmatprep.subr.mxu0 0.0
    %500 = vmatpush1.msra.mxu0 0.0
    %501 = vmatprep.subr.mxu0 0.0
    %502 = vmatpush1.msra.mxu0 0.0
    %503 = vmatprep.mubr.f32.mxu0 0.0
    %504 = vmatmul.mubr.f32.gmra.mrb[0].mxu0 %v437
    %v505 = vpop.f32.mrb[0].mxu0
    %v506 = vadd.f32 0.0, %v505
    %v507 = vpop.f32.mrb[0].mxu0
    %508 = vdwg.mxu0
    %509 = vrot.lane.b32.xlu0 %v172, 120
    %v510 = vpop.permute.xlu0 %509
    %511 = vrot.lane.b32.xlu0 %v172, 88
    %v512 = vpop.permute.xlu0 %511
    %v513 = vsel %vm183, %v510, 0
    %v515 = vsel %vm183, %v512, 0
    %517 = vmatprep.subr.mxu0 0.0
    %518 = vmatpush1.xpose.msra.mxu0 %v515
    %519 = vmatprep.subr.mxu0 0.0
    %520 = vmatpush1.xpose.msra.mxu0 0.0
    %521 = vmatprep.subr.mxu0 0.0
    %522 = vmatpush1.xpose.msra.mxu0 0.0
    %523 = vmatprep.subr.mxu0 0.0
    %524 = vmatpush1.xpose.msra.mxu0 0.0
    %525 = vmatprep.subr.mxu0 0.0
    %526 = vmatpush1.xpose.msra.mxu0 0.0
    %527 = vmatprep.subr.mxu0 0.0
    %528 = vmatpush1.xpose.msra.mxu0 0.0
    %529 = vmatprep.subr.mxu0 0.0
    %530 = vmatpush1.xpose.msra.mxu0 0.0
    %531 = vmatprep.subr.mxu0 0.0
    %532 = vmatpush1.xpose.msra.mxu0 0.0
    %533 = vmatprep.subr.mxu0 0.0
    %534 = vmatpush1.xpose.msra.mxu0 0.0
    %535 = vmatprep.subr.mxu0 0.0
    %536 = vmatpush1.xpose.msra.mxu0 0.0
    %537 = vmatprep.subr.mxu0 0.0
    %538 = vmatpush1.xpose.msra.mxu0 0.0
    %539 = vmatprep.subr.mxu0 0.0
    %540 = vmatpush1.xpose.msra.mxu0 0.0
    %541 = vmatprep.subr.mxu0 0.0
    %542 = vmatpush1.xpose.msra.mxu0 0.0
    %543 = vmatprep.subr.mxu0 0.0
    %544 = vmatpush1.xpose.msra.mxu0 0.0
    %545 = vmatprep.subr.mxu0 0.0
    %546 = vmatpush1.xpose.msra.mxu0 0.0
    %547 = vmatprep.subr.mxu0 0.0
    %548 = vmatpush1.xpose.msra.mxu0 0.0
    %549 = vmatprep.subr.mxu0 0.0
    %550 = vmatpush1.xpose.msra.mxu0 0.0
    %551 = vmatprep.subr.mxu0 0.0
    %552 = vmatpush1.xpose.msra.mxu0 0.0
    %553 = vmatprep.subr.mxu0 0.0
    %554 = vmatpush1.xpose.msra.mxu0 0.0
    %555 = vmatprep.subr.mxu0 0.0
    %556 = vmatpush1.xpose.msra.mxu0 0.0
    %557 = vmatprep.subr.mxu0 0.0
    %558 = vmatpush1.xpose.msra.mxu0 0.0
    %559 = vmatprep.subr.mxu0 0.0
    %560 = vmatpush1.xpose.msra.mxu0 0.0
    %561 = vmatprep.subr.mxu0 0.0
    %562 = vmatpush1.xpose.msra.mxu0 0.0
    %563 = vmatprep.subr.mxu0 0.0
    %564 = vmatpush1.xpose.msra.mxu0 0.0
    %565 = vmatprep.subr.mxu0 0.0
    %566 = vmatpush1.xpose.msra.mxu0 0.0
    %567 = vmatprep.subr.mxu0 0.0
    %568 = vmatpush1.xpose.msra.mxu0 0.0
    %569 = vmatprep.subr.mxu0 0.0
    %570 = vmatpush1.xpose.msra.mxu0 0.0
    %571 = vmatprep.subr.mxu0 0.0
    %572 = vmatpush1.xpose.msra.mxu0 0.0
    %573 = vmatprep.subr.mxu0 0.0
    %574 = vmatpush1.xpose.msra.mxu0 0.0
    %575 = vmatprep.subr.mxu0 0.0
    %576 = vmatpush1.xpose.msra.mxu0 0.0
    %577 = vmatprep.subr.mxu0 0.0
    %578 = vmatpush1.xpose.msra.mxu0 0.0
    %579 = vmatprep.subr.mxu0 0.0
    %580 = vmatpush1.xpose.msra.mxu0 0.0
    %581 = vmatprep.mubr.f32.mxu0 0.0
    %582 = vmatmul.mubr.f32.gmra.mrb[0].mxu0 %v513
    %v583 = vpop.f32.mrb[0].mxu0
    %v584 = vadd.f32 0.0, %v583
    %v585 = vpop.f32.mrb[0].mxu0
    %586 = vdwg.mxu0
    %587 = vrot.lane.b32.xlu0 %v177, 120
    %v588 = vpop.permute.xlu0 %587
    %589 = vrot.lane.b32.xlu0 %v177, 88
    %v590 = vpop.permute.xlu0 %589
    %v591 = vsel %vm183, %v588, 0
    %v593 = vsel %vm183, %v590, 0
    %595 = vmatprep.subr.mxu0 0.0
    %596 = vmatpush1.xpose.msra.mxu0 %v593
    %597 = vmatprep.subr.mxu0 0.0
    %598 = vmatpush1.xpose.msra.mxu0 0.0
    %599 = vmatprep.subr.mxu0 0.0
    %600 = vmatpush1.xpose.msra.mxu0 0.0
    %601 = vmatprep.subr.mxu0 0.0
    %602 = vmatpush1.xpose.msra.mxu0 0.0
    %603 = vmatprep.subr.mxu0 0.0
    %604 = vmatpush1.xpose.msra.mxu0 0.0
    %605 = vmatprep.subr.mxu0 0.0
    %606 = vmatpush1.xpose.msra.mxu0 0.0
    %607 = vmatprep.subr.mxu0 0.0
    %608 = vmatpush1.xpose.msra.mxu0 0.0
    %609 = vmatprep.subr.mxu0 0.0
    %610 = vmatpush1.xpose.msra.mxu0 0.0
    %611 = vmatprep.subr.mxu0 0.0
    %612 = vmatpush1.xpose.msra.mxu0 0.0
    %613 = vmatprep.subr.mxu0 0.0
    %614 = vmatpush1.xpose.msra.mxu0 0.0
    %615 = vmatprep.subr.mxu0 0.0
    %616 = vmatpush1.xpose.msra.mxu0 0.0
    %617 = vmatprep.subr.mxu0 0.0
    %618 = vmatpush1.xpose.msra.mxu0 0.0
    %619 = vmatprep.subr.mxu0 0.0
    %620 = vmatpush1.xpose.msra.mxu0 0.0
    %621 = vmatprep.subr.mxu0 0.0
    %622 = vmatpush1.xpose.msra.mxu0 0.0
    %623 = vmatprep.subr.mxu0 0.0
    %624 = vmatpush1.xpose.msra.mxu0 0.0
    %625 = vmatprep.subr.mxu0 0.0
    %626 = vmatpush1.xpose.msra.mxu0 0.0
    %627 = vmatprep.subr.mxu0 0.0
    %628 = vmatpush1.xpose.msra.mxu0 0.0
    %629 = vmatprep.subr.mxu0 0.0
    %630 = vmatpush1.xpose.msra.mxu0 0.0
    %631 = vmatprep.subr.mxu0 0.0
    %632 = vmatpush1.xpose.msra.mxu0 0.0
    %633 = vmatprep.subr.mxu0 0.0
    %634 = vmatpush1.xpose.msra.mxu0 0.0
    %635 = vmatprep.subr.mxu0 0.0
    %636 = vmatpush1.xpose.msra.mxu0 0.0
    %637 = vmatprep.subr.mxu0 0.0
    %638 = vmatpush1.xpose.msra.mxu0 0.0
    %639 = vmatprep.subr.mxu0 0.0
    %640 = vmatpush1.xpose.msra.mxu0 0.0
    %641 = vmatprep.subr.mxu0 0.0
    %642 = vmatpush1.xpose.msra.mxu0 0.0
    %643 = vmatprep.subr.mxu0 0.0
    %644 = vmatpush1.xpose.msra.mxu0 0.0
    %645 = vmatprep.subr.mxu0 0.0
    %646 = vmatpush1.xpose.msra.mxu0 0.0
    %647 = vmatprep.subr.mxu0 0.0
    %648 = vmatpush1.xpose.msra.mxu0 0.0
    %649 = vmatprep.subr.mxu0 0.0
    %650 = vmatpush1.xpose.msra.mxu0 0.0
    %651 = vmatprep.subr.mxu0 0.0
    %652 = vmatpush1.xpose.msra.mxu0 0.0
    %653 = vmatprep.subr.mxu0 0.0
    %654 = vmatpush1.xpose.msra.mxu0 0.0
    %655 = vmatprep.subr.mxu0 0.0
    %656 = vmatpush1.xpose.msra.mxu0 0.0
    %657 = vmatprep.subr.mxu0 0.0
    %658 = vmatpush1.xpose.msra.mxu0 0.0
    %659 = vmatprep.mubr.f32.mxu0 0.0
    %660 = vmatmul.mubr.f32.gmra.mrb[0].mxu0 %v591
    %v661 = vpop.f32.mrb[0].mxu0
    %v662 = vadd.f32 0.0, %v661
    %v663 = vpop.f32.mrb[0].mxu0
    %664 = vdwg.mxu0
    %v665 = vsel %vm183, %v584, -inf
    %666 = vmax.xlane.f32.xlu0 %v665
    %v667 = vpop.xlane.xlu0 %666
    %v668 = vsel %vm183, %v662, -inf
    %669 = vmax.xlane.f32.xlu0 %v668
    %v670 = vpop.xlane.xlu0 %669
    %v671 = vsub.f32 %v584, %v667
    %v672 = vsub.f32 %v662, %v670
    %v673 = vmul.f32 %v671, 1.442695
    %v674 = vpow.pop %v673
    %v675 = vmul.f32 %v672, 1.442695
    %v676 = vpow.pop %v675
    %v677 = vsel %vm183, %v674, 0.0
    %678 = vadd.xlane.f32.xlu0 %v677
    %v679 = vpop.xlane.xlu0 %678
    %v680 = vsel %vm183, %v676, 0.0
    %681 = vadd.xlane.f32.xlu0 %v680
    %v682 = vpop.xlane.xlu0 %681
    %v683 = vrcp.pop %v679
    %v684 = vrcp.pop %v682
    %v685 = vmul.f32 %v674, %v683
    %v686 = vmul.f32 %v676, %v684
    %687 = vrot.lane.b32.xlu0 %v172, 56
    %v688 = vpop.permute.xlu0 %687
    %v691 = vsel %vm183, %v685, 0
    %693 = vmatprep.subr.mxu0 0.0
    %694 = vmatpush1.msra.mxu0 %v688
    %695 = vmatprep.subr.mxu0 0.0
    %696 = vmatpush1.msra.mxu0 0.0
    %697 = vmatprep.subr.mxu0 0.0
    %698 = vmatpush1.msra.mxu0 0.0
    %699 = vmatprep.subr.mxu0 0.0
    %700 = vmatpush1.msra.mxu0 0.0
    %701 = vmatprep.subr.mxu0 0.0
    %702 = vmatpush1.msra.mxu0 0.0
    %703 = vmatprep.subr.mxu0 0.0
    %704 = vmatpush1.msra.mxu0 0.0
    %705 = vmatprep.subr.mxu0 0.0
    %706 = vmatpush1.msra.mxu0 0.0
    %707 = vmatprep.subr.mxu0 0.0
    %708 = vmatpush1.msra.mxu0 0.0
    %709 = vmatprep.subr.mxu0 0.0
    %710 = vmatpush1.msra.mxu0 0.0
    %711 = vmatprep.subr.mxu0 0.0
    %712 = vmatpush1.msra.mxu0 0.0
    %713 = vmatprep.subr.mxu0 0.0
    %714 = vmatpush1.msra.mxu0 0.0
    %715 = vmatprep.subr.mxu0 0.0
    %716 = vmatpush1.msra.mxu0 0.0
    %717 = vmatprep.subr.mxu0 0.0
    %718 = vmatpush1.msra.mxu0 0.0
    %719 = vmatprep.subr.mxu0 0.0
    %720 = vmatpush1.msra.mxu0 0.0
    %721 = vmatprep.subr.mxu0 0.0
    %722 = vmatpush1.msra.mxu0 0.0
    %723 = vmatprep.subr.mxu0 0.0
    %724 = vmatpush1.msra.mxu0 0.0
    %725 = vmatprep.subr.mxu0 0.0
    %726 = vmatpush1.msra.mxu0 0.0
    %727 = vmatprep.subr.mxu0 0.0
    %728 = vmatpush1.msra.mxu0 0.0
    %729 = vmatprep.subr.mxu0 0.0
    %730 = vmatpush1.msra.mxu0 0.0
    %731 = vmatprep.subr.mxu0 0.0
    %732 = vmatpush1.msra.mxu0 0.0
    %733 = vmatprep.subr.mxu0 0.0
    %734 = vmatpush1.msra.mxu0 0.0
    %735 = vmatprep.subr.mxu0 0.0
    %736 = vmatpush1.msra.mxu0 0.0
    %737 = vmatprep.subr.mxu0 0.0
    %738 = vmatpush1.msra.mxu0 0.0
    %739 = vmatprep.subr.mxu0 0.0
    %740 = vmatpush1.msra.mxu0 0.0
    %741 = vmatprep.subr.mxu0 0.0
    %742 = vmatpush1.msra.mxu0 0.0
    %743 = vmatprep.subr.mxu0 0.0
    %744 = vmatpush1.msra.mxu0 0.0
    %745 = vmatprep.subr.mxu0 0.0
    %746 = vmatpush1.msra.mxu0 0.0
    %747 = vmatprep.subr.mxu0 0.0
    %748 = vmatpush1.msra.mxu0 0.0
    %749 = vmatprep.subr.mxu0 0.0
    %750 = vmatpush1.msra.mxu0 0.0
    %751 = vmatprep.subr.mxu0 0.0
    %752 = vmatpush1.msra.mxu0 0.0
    %753 = vmatprep.subr.mxu0 0.0
    %754 = vmatpush1.msra.mxu0 0.0
    %755 = vmatprep.subr.mxu0 0.0
    %756 = vmatpush1.msra.mxu0 0.0
    %757 = vmatprep.mubr.f32.mxu0 0.0
    %758 = vmatmul.mubr.f32.gmra.mrb[0].mxu0 %v691
    %v759 = vpop.f32.mrb[0].mxu0
    %v760 = vadd.f32 0.0, %v759
    %v761 = vpop.f32.mrb[0].mxu0
    %762 = vdwg.mxu0
    %763 = vrot.lane.b32.xlu0 %v177, 56
    %v764 = vpop.permute.xlu0 %763
    %v767 = vsel %vm183, %v686, 0
    %769 = vmatprep.subr.mxu0 0.0
    %770 = vmatpush1.msra.mxu0 %v764
    %771 = vmatprep.subr.mxu0 0.0
    %772 = vmatpush1.msra.mxu0 0.0
    %773 = vmatprep.subr.mxu0 0.0
    %774 = vmatpush1.msra.mxu0 0.0
    %775 = vmatprep.subr.mxu0 0.0
    %776 = vmatpush1.msra.mxu0 0.0
    %777 = vmatprep.subr.mxu0 0.0
    %778 = vmatpush1.msra.mxu0 0.0
    %779 = vmatprep.subr.mxu0 0.0
    %780 = vmatpush1.msra.mxu0 0.0
    %781 = vmatprep.subr.mxu0 0.0
    %782 = vmatpush1.msra.mxu0 0.0
    %783 = vmatprep.subr.mxu0 0.0
    %784 = vmatpush1.msra.mxu0 0.0
    %785 = vmatprep.subr.mxu0 0.0
    %786 = vmatpush1.msra.mxu0 0.0
    %787 = vmatprep.subr.mxu0 0.0
    %788 = vmatpush1.msra.mxu0 0.0
    %789 = vmatprep.subr.mxu0 0.0
    %790 = vmatpush1.msra.mxu0 0.0
    %791 = vmatprep.subr.mxu0 0.0
    %792 = vmatpush1.msra.mxu0 0.0
    %793 = vmatprep.subr.mxu0 0.0
    %794 = vmatpush1.msra.mxu0 0.0
    %795 = vmatprep.subr.mxu0 0.0
    %796 = vmatpush1.msra.mxu0 0.0
    %797 = vmatprep.subr.mxu0 0.0
    %798 = vmatpush1.msra.mxu0 0.0
    %799 = vmatprep.subr.mxu0 0.0
    %800 = vmatpush1.msra.mxu0 0.0
    %801 = vmatprep.subr.mxu0 0.0
    %802 = vmatpush1.msra.mxu0 0.0
    %803 = vmatprep.subr.mxu0 0.0
    %804 = vmatpush1.msra.mxu0 0.0
    %805 = vmatprep.subr.mxu0 0.0
    %806 = vmatpush1.msra.mxu0 0.0
    %807 = vmatprep.subr.mxu0 0.0
    %808 = vmatpush1.msra.mxu0 0.0
    %809 = vmatprep.subr.mxu0 0.0
    %810 = vmatpush1.msra.mxu0 0.0
    %811 = vmatprep.subr.mxu0 0.0
    %812 = vmatpush1.msra.mxu0 0.0
    %813 = vmatprep.subr.mxu0 0.0
    %814 = vmatpush1.msra.mxu0 0.0
    %815 = vmatprep.subr.mxu0 0.0
    %816 = vmatpush1.msra.mxu0 0.0
    %817 = vmatprep.subr.mxu0 0.0
    %818 = vmatpush1.msra.mxu0 0.0
    %819 = vmatprep.subr.mxu0 0.0
    %820 = vmatpush1.msra.mxu0 0.0
    %821 = vmatprep.subr.mxu0 0.0
    %822 = vmatpush1.msra.mxu0 0.0
    %823 = vmatprep.subr.mxu0 0.0
    %824 = vmatpush1.msra.mxu0 0.0
    %825 = vmatprep.subr.mxu0 0.0
    %826 = vmatpush1.msra.mxu0 0.0
    %827 = vmatprep.subr.mxu0 0.0
    %828 = vmatpush1.msra.mxu0 0.0
    %829 = vmatprep.subr.mxu0 0.0
    %830 = vmatpush1.msra.mxu0 0.0
    %831 = vmatprep.subr.mxu0 0.0
    %832 = vmatpush1.msra.mxu0 0.0
    %833 = vmatprep.mubr.f32.mxu0 0.0
    %834 = vmatmul.mubr.f32.gmra.mrb[0].mxu0 %v767
    %v835 = vpop.f32.mrb[0].mxu0
    %v836 = vadd.f32 0.0, %v835
    %v837 = vpop.f32.mrb[0].mxu0
    %838 = vdwg.mxu0
    %839 = vrot.lane.b32.xlu0 %v172, 112
    %v840 = vpop.permute.xlu0 %839
    %841 = vrot.lane.b32.xlu0 %v172, 80
    %v842 = vpop.permute.xlu0 %841
    %v843 = vsel %vm183, %v840, 0
    %v845 = vsel %vm183, %v842, 0
    %847 = vmatprep.subr.mxu0 0.0
    %848 = vmatpush1.xpose.msra.mxu0 %v845
    %849 = vmatprep.subr.mxu0 0.0
    %850 = vmatpush1.xpose.msra.mxu0 0.0
    %851 = vmatprep.subr.mxu0 0.0
    %852 = vmatpush1.xpose.msra.mxu0 0.0
    %853 = vmatprep.subr.mxu0 0.0
    %854 = vmatpush1.xpose.msra.mxu0 0.0
    %855 = vmatprep.subr.mxu0 0.0
    %856 = vmatpush1.xpose.msra.mxu0 0.0
    %857 = vmatprep.subr.mxu0 0.0
    %858 = vmatpush1.xpose.msra.mxu0 0.0
    %859 = vmatprep.subr.mxu0 0.0
    %860 = vmatpush1.xpose.msra.mxu0 0.0
    %861 = vmatprep.subr.mxu0 0.0
    %862 = vmatpush1.xpose.msra.mxu0 0.0
    %863 = vmatprep.subr.mxu0 0.0
    %864 = vmatpush1.xpose.msra.mxu0 0.0
    %865 = vmatprep.subr.mxu0 0.0
    %866 = vmatpush1.xpose.msra.mxu0 0.0
    %867 = vmatprep.subr.mxu0 0.0
    %868 = vmatpush1.xpose.msra.mxu0 0.0
    %869 = vmatprep.subr.mxu0 0.0
    %870 = vmatpush1.xpose.msra.mxu0 0.0
    %871 = vmatprep.subr.mxu0 0.0
    %872 = vmatpush1.xpose.msra.mxu0 0.0
    %873 = vmatprep.subr.mxu0 0.0
    %874 = vmatpush1.xpose.msra.mxu0 0.0
    %875 = vmatprep.subr.mxu0 0.0
    %876 = vmatpush1.xpose.msra.mxu0 0.0
    %877 = vmatprep.subr.mxu0 0.0
    %878 = vmatpush1.xpose.msra.mxu0 0.0
    %879 = vmatprep.subr.mxu0 0.0
    %880 = vmatpush1.xpose.msra.mxu0 0.0
    %881 = vmatprep.subr.mxu0 0.0
    %882 = vmatpush1.xpose.msra.mxu0 0.0
    %883 = vmatprep.subr.mxu0 0.0
    %884 = vmatpush1.xpose.msra.mxu0 0.0
    %885 = vmatprep.subr.mxu0 0.0
    %886 = vmatpush1.xpose.msra.mxu0 0.0
    %887 = vmatprep.subr.mxu0 0.0
    %888 = vmatpush1.xpose.msra.mxu0 0.0
    %889 = vmatprep.subr.mxu0 0.0
    %890 = vmatpush1.xpose.msra.mxu0 0.0
    %891 = vmatprep.subr.mxu0 0.0
    %892 = vmatpush1.xpose.msra.mxu0 0.0
    %893 = vmatprep.subr.mxu0 0.0
    %894 = vmatpush1.xpose.msra.mxu0 0.0
    %895 = vmatprep.subr.mxu0 0.0
    %896 = vmatpush1.xpose.msra.mxu0 0.0
    %897 = vmatprep.subr.mxu0 0.0
    %898 = vmatpush1.xpose.msra.mxu0 0.0
    %899 = vmatprep.subr.mxu0 0.0
    %900 = vmatpush1.xpose.msra.mxu0 0.0
    %901 = vmatprep.subr.mxu0 0.0
    %902 = vmatpush1.xpose.msra.mxu0 0.0
    %903 = vmatprep.subr.mxu0 0.0
    %904 = vmatpush1.xpose.msra.mxu0 0.0
    %905 = vmatprep.subr.mxu0 0.0
    %906 = vmatpush1.xpose.msra.mxu0 0.0
    %907 = vmatprep.subr.mxu0 0.0
    %908 = vmatpush1.xpose.msra.mxu0 0.0
    %909 = vmatprep.subr.mxu0 0.0
    %910 = vmatpush1.xpose.msra.mxu0 0.0
    %911 = vmatprep.mubr.f32.mxu0 0.0
    %912 = vmatmul.mubr.f32.gmra.mrb[0].mxu0 %v843
    %v913 = vpop.f32.mrb[0].mxu0
    %v914 = vadd.f32 0.0, %v913
    %v915 = vpop.f32.mrb[0].mxu0
    %916 = vdwg.mxu0
    %917 = vrot.lane.b32.xlu0 %v177, 112
    %v918 = vpop.permute.xlu0 %917
    %919 = vrot.lane.b32.xlu0 %v177, 80
    %v920 = vpop.permute.xlu0 %919
    %v921 = vsel %vm183, %v918, 0
    %v923 = vsel %vm183, %v920, 0
    %925 = vmatprep.subr.mxu0 0.0
    %926 = vmatpush1.xpose.msra.mxu0 %v923
    %927 = vmatprep.subr.mxu0 0.0
    %928 = vmatpush1.xpose.msra.mxu0 0.0
    %929 = vmatprep.subr.mxu0 0.0
    %930 = vmatpush1.xpose.msra.mxu0 0.0
    %931 = vmatprep.subr.mxu0 0.0
    %932 = vmatpush1.xpose.msra.mxu0 0.0
    %933 = vmatprep.subr.mxu0 0.0
    %934 = vmatpush1.xpose.msra.mxu0 0.0
    %935 = vmatprep.subr.mxu0 0.0
    %936 = vmatpush1.xpose.msra.mxu0 0.0
    %937 = vmatprep.subr.mxu0 0.0
    %938 = vmatpush1.xpose.msra.mxu0 0.0
    %939 = vmatprep.subr.mxu0 0.0
    %940 = vmatpush1.xpose.msra.mxu0 0.0
    %941 = vmatprep.subr.mxu0 0.0
    %942 = vmatpush1.xpose.msra.mxu0 0.0
    %943 = vmatprep.subr.mxu0 0.0
    %944 = vmatpush1.xpose.msra.mxu0 0.0
    %945 = vmatprep.subr.mxu0 0.0
    %946 = vmatpush1.xpose.msra.mxu0 0.0
    %947 = vmatprep.subr.mxu0 0.0
    %948 = vmatpush1.xpose.msra.mxu0 0.0
    %949 = vmatprep.subr.mxu0 0.0
    %950 = vmatpush1.xpose.msra.mxu0 0.0
    %951 = vmatprep.subr.mxu0 0.0
    %952 = vmatpush1.xpose.msra.mxu0 0.0
    %953 = vmatprep.subr.mxu0 0.0
    %954 = vmatpush1.xpose.msra.mxu0 0.0
    %955 = vmatprep.subr.mxu0 0.0
    %956 = vmatpush1.xpose.msra.mxu0 0.0
    %957 = vmatprep.subr.mxu0 0.0
    %958 = vmatpush1.xpose.msra.mxu0 0.0
    %959 = vmatprep.subr.mxu0 0.0
    %960 = vmatpush1.xpose.msra.mxu0 0.0
    %961 = vmatprep.subr.mxu0 0.0
    %962 = vmatpush1.xpose.msra.mxu0 0.0
    %963 = vmatprep.subr.mxu0 0.0
    %964 = vmatpush1.xpose.msra.mxu0 0.0
    %965 = vmatprep.subr.mxu0 0.0
    %966 = vmatpush1.xpose.msra.mxu0 0.0
    %967 = vmatprep.subr.mxu0 0.0
    %968 = vmatpush1.xpose.msra.mxu0 0.0
    %969 = vmatprep.subr.mxu0 0.0
    %970 = vmatpush1.xpose.msra.mxu0 0.0
    %971 = vmatprep.subr.mxu0 0.0
    %972 = vmatpush1.xpose.msra.mxu0 0.0
    %973 = vmatprep.subr.mxu0 0.0
    %974 = vmatpush1.xpose.msra.mxu0 0.0
    %975 = vmatprep.subr.mxu0 0.0
    %976 = vmatpush1.xpose.msra.mxu0 0.0
    %977 = vmatprep.subr.mxu0 0.0
    %978 = vmatpush1.xpose.msra.mxu0 0.0
    %979 = vmatprep.subr.mxu0 0.0
    %980 = vmatpush1.xpose.msra.mxu0 0.0
    %981 = vmatprep.subr.mxu0 0.0
    %982 = vmatpush1.xpose.msra.mxu0 0.0
    %983 = vmatprep.subr.mxu0 0.0
    %984 = vmatpush1.xpose.msra.mxu0 0.0
    %985 = vmatprep.subr.mxu0 0.0
    %986 = vmatpush1.xpose.msra.mxu0 0.0
    %987 = vmatprep.subr.mxu0 0.0
    %988 = vmatpush1.xpose.msra.mxu0 0.0
    %989 = vmatprep.mubr.f32.mxu0 0.0
    %990 = vmatmul.mubr.f32.gmra.mrb[0].mxu0 %v921
    %v991 = vpop.f32.mrb[0].mxu0
    %v992 = vadd.f32 0.0, %v991
    %v993 = vpop.f32.mrb[0].mxu0
    %994 = vdwg.mxu0
    %v995 = vsel %vm183, %v914, -inf
    %996 = vmax.xlane.f32.xlu0 %v995
    %v997 = vpop.xlane.xlu0 %996
    %v998 = vsel %vm183, %v992, -inf
    %999 = vmax.xlane.f32.xlu0 %v998
    %v1000 = vpop.xlane.xlu0 %999
    %v1001 = vsub.f32 %v914, %v997
    %v1002 = vsub.f32 %v992, %v1000
    %v1003 = vmul.f32 %v1001, 1.442695
    %v1004 = vpow.pop %v1003
    %v1005 = vmul.f32 %v1002, 1.442695
    %v1006 = vpow.pop %v1005
    %v1007 = vsel %vm183, %v1004, 0.0
    %1008 = vadd.xlane.f32.xlu0 %v1007
    %v1009 = vpop.xlane.xlu0 %1008
    %v1010 = vsel %vm183, %v1006, 0.0
    %1011 = vadd.xlane.f32.xlu0 %v1010
    %v1012 = vpop.xlane.xlu0 %1011
    %v1013 = vrcp.pop %v1009
    %v1014 = vrcp.pop %v1012
    %v1015 = vmul.f32 %v1004, %v1013
    %v1016 = vmul.f32 %v1006, %v1014
    %1017 = vrot.lane.b32.xlu0 %v172, 48
    %v1018 = vpop.permute.xlu0 %1017
    %v1021 = vsel %vm183, %v1015, 0
    %1023 = vmatprep.subr.mxu0 0.0
    %1024 = vmatpush1.msra.mxu0 %v1018
    %1025 = vmatprep.subr.mxu0 0.0
    %1026 = vmatpush1.msra.mxu0 0.0
    %1027 = vmatprep.subr.mxu0 0.0
    %1028 = vmatpush1.msra.mxu0 0.0
    %1029 = vmatprep.subr.mxu0 0.0
    %1030 = vmatpush1.msra.mxu0 0.0
    %1031 = vmatprep.subr.mxu0 0.0
    %1032 = vmatpush1.msra.mxu0 0.0
    %1033 = vmatprep.subr.mxu0 0.0
    %1034 = vmatpush1.msra.mxu0 0.0
    %1035 = vmatprep.subr.mxu0 0.0
    %1036 = vmatpush1.msra.mxu0 0.0
    %1037 = vmatprep.subr.mxu0 0.0
    %1038 = vmatpush1.msra.mxu0 0.0
    %1039 = vmatprep.subr.mxu0 0.0
    %1040 = vmatpush1.msra.mxu0 0.0
    %1041 = vmatprep.subr.mxu0 0.0
    %1042 = vmatpush1.msra.mxu0 0.0
    %1043 = vmatprep.subr.mxu0 0.0
    %1044 = vmatpush1.msra.mxu0 0.0
    %1045 = vmatprep.subr.mxu0 0.0
    %1046 = vmatpush1.msra.mxu0 0.0
    %1047 = vmatprep.subr.mxu0 0.0
    %1048 = vmatpush1.msra.mxu0 0.0
    %1049 = vmatprep.subr.mxu0 0.0
    %1050 = vmatpush1.msra.mxu0 0.0
    %1051 = vmatprep.subr.mxu0 0.0
    %1052 = vmatpush1.msra.mxu0 0.0
    %1053 = vmatprep.subr.mxu0 0.0
    %1054 = vmatpush1.msra.mxu0 0.0
    %1055 = vmatprep.subr.mxu0 0.0
    %1056 = vmatpush1.msra.mxu0 0.0
    %1057 = vmatprep.subr.mxu0 0.0
    %1058 = vmatpush1.msra.mxu0 0.0
    %1059 = vmatprep.subr.mxu0 0.0
    %1060 = vmatpush1.msra.mxu0 0.0
    %1061 = vmatprep.subr.mxu0 0.0
    %1062 = vmatpush1.msra.mxu0 0.0
    %1063 = vmatprep.subr.mxu0 0.0
    %1064 = vmatpush1.msra.mxu0 0.0
    %1065 = vmatprep.subr.mxu0 0.0
    %1066 = vmatpush1.msra.mxu0 0.0
    %1067 = vmatprep.subr.mxu0 0.0
    %1068 = vmatpush1.msra.mxu0 0.0
    %1069 = vmatprep.subr.mxu0 0.0
    %1070 = vmatpush1.msra.mxu0 0.0
    %1071 = vmatprep.subr.mxu0 0.0
    %1072 = vmatpush1.msra.mxu0 0.0
    %1073 = vmatprep.subr.mxu0 0.0
    %1074 = vmatpush1.msra.mxu0 0.0
    %1075 = vmatprep.subr.mxu0 0.0
    %1076 = vmatpush1.msra.mxu0 0.0
    %1077 = vmatprep.subr.mxu0 0.0
    %1078 = vmatpush1.msra.mxu0 0.0
    %1079 = vmatprep.subr.mxu0 0.0
    %1080 = vmatpush1.msra.mxu0 0.0
    %1081 = vmatprep.subr.mxu0 0.0
    %1082 = vmatpush1.msra.mxu0 0.0
    %1083 = vmatprep.subr.mxu0 0.0
    %1084 = vmatpush1.msra.mxu0 0.0
    %1085 = vmatprep.subr.mxu0 0.0
    %1086 = vmatpush1.msra.mxu0 0.0
    %1087 = vmatprep.mubr.f32.mxu0 0.0
    %1088 = vmatmul.mubr.f32.gmra.mrb[0].mxu0 %v1021
    %v1089 = vpop.f32.mrb[0].mxu0
    %v1090 = vadd.f32 0.0, %v1089
    %v1091 = vpop.f32.mrb[0].mxu0
    %1092 = vdwg.mxu0
    %1093 = vrot.lane.b32.xlu0 %v177, 48
    %v1094 = vpop.permute.xlu0 %1093
    %v1097 = vsel %vm183, %v1016, 0
    %1099 = vmatprep.subr.mxu0 0.0
    %1100 = vmatpush1.msra.mxu0 %v1094
    %1101 = vmatprep.subr.mxu0 0.0
    %1102 = vmatpush1.msra.mxu0 0.0
    %1103 = vmatprep.subr.mxu0 0.0
    %1104 = vmatpush1.msra.mxu0 0.0
    %1105 = vmatprep.subr.mxu0 0.0
    %1106 = vmatpush1.msra.mxu0 0.0
    %1107 = vmatprep.subr.mxu0 0.0
    %1108 = vmatpush1.msra.mxu0 0.0
    %1109 = vmatprep.subr.mxu0 0.0
    %1110 = vmatpush1.msra.mxu0 0.0
    %1111 = vmatprep.subr.mxu0 0.0
    %1112 = vmatpush1.msra.mxu0 0.0
    %1113 = vmatprep.subr.mxu0 0.0
    %1114 = vmatpush1.msra.mxu0 0.0
    %1115 = vmatprep.subr.mxu0 0.0
    %1116 = vmatpush1.msra.mxu0 0.0
    %1117 = vmatprep.subr.mxu0 0.0
    %1118 = vmatpush1.msra.mxu0 0.0
    %1119 = vmatprep.subr.mxu0 0.0
    %1120 = vmatpush1.msra.mxu0 0.0
    %1121 = vmatprep.subr.mxu0 0.0
    %1122 = vmatpush1.msra.mxu0 0.0
    %1123 = vmatprep.subr.mxu0 0.0
    %1124 = vmatpush1.msra.mxu0 0.0
    %1125 = vmatprep.subr.mxu0 0.0
    %1126 = vmatpush1.msra.mxu0 0.0
    %1127 = vmatprep.subr.mxu0 0.0
    %1128 = vmatpush1.msra.mxu0 0.0
    %1129 = vmatprep.subr.mxu0 0.0
    %1130 = vmatpush1.msra.mxu0 0.0
    %1131 = vmatprep.subr.mxu0 0.0
    %1132 = vmatpush1.msra.mxu0 0.0
    %1133 = vmatprep.subr.mxu0 0.0
    %1134 = vmatpush1.msra.mxu0 0.0
    %1135 = vmatprep.subr.mxu0 0.0
    %1136 = vmatpush1.msra.mxu0 0.0
    %1137 = vmatprep.subr.mxu0 0.0
    %1138 = vmatpush1.msra.mxu0 0.0
    %1139 = vmatprep.subr.mxu0 0.0
    %1140 = vmatpush1.msra.mxu0 0.0
    %1141 = vmatprep.subr.mxu0 0.0
    %1142 = vmatpush1.msra.mxu0 0.0
    %1143 = vmatprep.subr.mxu0 0.0
    %1144 = vmatpush1.msra.mxu0 0.0
    %1145 = vmatprep.subr.mxu0 0.0
    %1146 = vmatpush1.msra.mxu0 0.0
    %1147 = vmatprep.subr.mxu0 0.0
    %1148 = vmatpush1.msra.mxu0 0.0
    %1149 = vmatprep.subr.mxu0 0.0
    %1150 = vmatpush1.msra.mxu0 0.0
    %1151 = vmatprep.subr.mxu0 0.0
    %1152 = vmatpush1.msra.mxu0 0.0
    %1153 = vmatprep.subr.mxu0 0.0
    %1154 = vmatpush1.msra.mxu0 0.0
    %1155 = vmatprep.subr.mxu0 0.0
    %1156 = vmatpush1.msra.mxu0 0.0
    %1157 = vmatprep.subr.mxu0 0.0
    %1158 = vmatpush1.msra.mxu0 0.0
    %1159 = vmatprep.subr.mxu0 0.0
    %1160 = vmatpush1.msra.mxu0 0.0
    %1161 = vmatprep.subr.mxu0 0.0
    %1162 = vmatpush1.msra.mxu0 0.0
    %1163 = vmatprep.mubr.f32.mxu0 0.0
    %1164 = vmatmul.mubr.f32.gmra.mrb[0].mxu0 %v1097
    %v1165 = vpop.f32.mrb[0].mxu0
    %v1166 = vadd.f32 0.0, %v1165
    %v1167 = vpop.f32.mrb[0].mxu0
    %1168 = vdwg.mxu0
    %1169 = vrot.lane.b32.xlu0 %v172, 104
    %v1170 = vpop.permute.xlu0 %1169
    %1171 = vrot.lane.b32.xlu0 %v172, 72
    %v1172 = vpop.permute.xlu0 %1171
    %v1173 = vsel %vm183, %v1170, 0
    %v1175 = vsel %vm183, %v1172, 0
    %1177 = vmatprep.subr.mxu0 0.0
    %1178 = vmatpush1.xpose.msra.mxu0 %v1175
    %1179 = vmatprep.subr.mxu0 0.0
    %1180 = vmatpush1.xpose.msra.mxu0 0.0
    %1181 = vmatprep.subr.mxu0 0.0
    %1182 = vmatpush1.xpose.msra.mxu0 0.0
    %1183 = vmatprep.subr.mxu0 0.0
    %1184 = vmatpush1.xpose.msra.mxu0 0.0
    %1185 = vmatprep.subr.mxu0 0.0
    %1186 = vmatpush1.xpose.msra.mxu0 0.0
    %1187 = vmatprep.subr.mxu0 0.0
    %1188 = vmatpush1.xpose.msra.mxu0 0.0
    %1189 = vmatprep.subr.mxu0 0.0
    %1190 = vmatpush1.xpose.msra.mxu0 0.0
    %1191 = vmatprep.subr.mxu0 0.0
    %1192 = vmatpush1.xpose.msra.mxu0 0.0
    %1193 = vmatprep.subr.mxu0 0.0
    %1194 = vmatpush1.xpose.msra.mxu0 0.0
    %1195 = vmatprep.subr.mxu0 0.0
    %1196 = vmatpush1.xpose.msra.mxu0 0.0
    %1197 = vmatprep.subr.mxu0 0.0
    %1198 = vmatpush1.xpose.msra.mxu0 0.0
    %1199 = vmatprep.subr.mxu0 0.0
    %1200 = vmatpush1.xpose.msra.mxu0 0.0
    %1201 = vmatprep.subr.mxu0 0.0
    %1202 = vmatpush1.xpose.msra.mxu0 0.0
    %1203 = vmatprep.subr.mxu0 0.0
    %1204 = vmatpush1.xpose.msra.mxu0 0.0
    %1205 = vmatprep.subr.mxu0 0.0
    %1206 = vmatpush1.xpose.msra.mxu0 0.0
    %1207 = vmatprep.subr.mxu0 0.0
    %1208 = vmatpush1.xpose.msra.mxu0 0.0
    %1209 = vmatprep.subr.mxu0 0.0
    %1210 = vmatpush1.xpose.msra.mxu0 0.0
    %1211 = vmatprep.subr.mxu0 0.0
    %1212 = vmatpush1.xpose.msra.mxu0 0.0
    %1213 = vmatprep.subr.mxu0 0.0
    %1214 = vmatpush1.xpose.msra.mxu0 0.0
    %1215 = vmatprep.subr.mxu0 0.0
    %1216 = vmatpush1.xpose.msra.mxu0 0.0
    %1217 = vmatprep.subr.mxu0 0.0
    %1218 = vmatpush1.xpose.msra.mxu0 0.0
    %1219 = vmatprep.subr.mxu0 0.0
    %1220 = vmatpush1.xpose.msra.mxu0 0.0
    %1221 = vmatprep.subr.mxu0 0.0
    %1222 = vmatpush1.xpose.msra.mxu0 0.0
    %1223 = vmatprep.subr.mxu0 0.0
    %1224 = vmatpush1.xpose.msra.mxu0 0.0
    %1225 = vmatprep.subr.mxu0 0.0
    %1226 = vmatpush1.xpose.msra.mxu0 0.0
    %1227 = vmatprep.subr.mxu0 0.0
    %1228 = vmatpush1.xpose.msra.mxu0 0.0
    %1229 = vmatprep.subr.mxu0 0.0
    %1230 = vmatpush1.xpose.msra.mxu0 0.0
    %1231 = vmatprep.subr.mxu0 0.0
    %1232 = vmatpush1.xpose.msra.mxu0 0.0
    %1233 = vmatprep.subr.mxu0 0.0
    %1234 = vmatpush1.xpose.msra.mxu0 0.0
    %1235 = vmatprep.subr.mxu0 0.0
    %1236 = vmatpush1.xpose.msra.mxu0 0.0
    %1237 = vmatprep.subr.mxu0 0.0
    %1238 = vmatpush1.xpose.msra.mxu0 0.0
    %1239 = vmatprep.subr.mxu0 0.0
    %1240 = vmatpush1.xpose.msra.mxu0 0.0
    %1241 = vmatprep.mubr.f32.mxu0 0.0
    %1242 = vmatmul.mubr.f32.gmra.mrb[0].mxu0 %v1173
    %v1243 = vpop.f32.mrb[0].mxu0
    %v1244 = vadd.f32 0.0, %v1243
    %v1245 = vpop.f32.mrb[0].mxu0
    %1246 = vdwg.mxu0
    %1247 = vrot.lane.b32.xlu0 %v177, 104
    %v1248 = vpop.permute.xlu0 %1247
    %1249 = vrot.lane.b32.xlu0 %v177, 72
    %v1250 = vpop.permute.xlu0 %1249
    %v1251 = vsel %vm183, %v1248, 0
    %v1253 = vsel %vm183, %v1250, 0
    %1255 = vmatprep.subr.mxu0 0.0
    %1256 = vmatpush1.xpose.msra.mxu0 %v1253
    %1257 = vmatprep.subr.mxu0 0.0
    %1258 = vmatpush1.xpose.msra.mxu0 0.0
    %1259 = vmatprep.subr.mxu0 0.0
    %1260 = vmatpush1.xpose.msra.mxu0 0.0
    %1261 = vmatprep.subr.mxu0 0.0
    %1262 = vmatpush1.xpose.msra.mxu0 0.0
    %1263 = vmatprep.subr.mxu0 0.0
    %1264 = vmatpush1.xpose.msra.mxu0 0.0
    %1265 = vmatprep.subr.mxu0 0.0
    %1266 = vmatpush1.xpose.msra.mxu0 0.0
    %1267 = vmatprep.subr.mxu0 0.0
    %1268 = vmatpush1.xpose.msra.mxu0 0.0
    %1269 = vmatprep.subr.mxu0 0.0
    %1270 = vmatpush1.xpose.msra.mxu0 0.0
    %1271 = vmatprep.subr.mxu0 0.0
    %1272 = vmatpush1.xpose.msra.mxu0 0.0
    %1273 = vmatprep.subr.mxu0 0.0
    %1274 = vmatpush1.xpose.msra.mxu0 0.0
    %1275 = vmatprep.subr.mxu0 0.0
    %1276 = vmatpush1.xpose.msra.mxu0 0.0
    %1277 = vmatprep.subr.mxu0 0.0
    %1278 = vmatpush1.xpose.msra.mxu0 0.0
    %1279 = vmatprep.subr.mxu0 0.0
    %1280 = vmatpush1.xpose.msra.mxu0 0.0
    %1281 = vmatprep.subr.mxu0 0.0
    %1282 = vmatpush1.xpose.msra.mxu0 0.0
    %1283 = vmatprep.subr.mxu0 0.0
    %1284 = vmatpush1.xpose.msra.mxu0 0.0
    %1285 = vmatprep.subr.mxu0 0.0
    %1286 = vmatpush1.xpose.msra.mxu0 0.0
    %1287 = vmatprep.subr.mxu0 0.0
    %1288 = vmatpush1.xpose.msra.mxu0 0.0
    %1289 = vmatprep.subr.mxu0 0.0
    %1290 = vmatpush1.xpose.msra.mxu0 0.0
    %1291 = vmatprep.subr.mxu0 0.0
    %1292 = vmatpush1.xpose.msra.mxu0 0.0
    %1293 = vmatprep.subr.mxu0 0.0
    %1294 = vmatpush1.xpose.msra.mxu0 0.0
    %1295 = vmatprep.subr.mxu0 0.0
    %1296 = vmatpush1.xpose.msra.mxu0 0.0
    %1297 = vmatprep.subr.mxu0 0.0
    %1298 = vmatpush1.xpose.msra.mxu0 0.0
    %1299 = vmatprep.subr.mxu0 0.0
    %1300 = vmatpush1.xpose.msra.mxu0 0.0
    %1301 = vmatprep.subr.mxu0 0.0
    %1302 = vmatpush1.xpose.msra.mxu0 0.0
    %1303 = vmatprep.subr.mxu0 0.0
    %1304 = vmatpush1.xpose.msra.mxu0 0.0
    %1305 = vmatprep.subr.mxu0 0.0
    %1306 = vmatpush1.xpose.msra.mxu0 0.0
    %1307 = vmatprep.subr.mxu0 0.0
    %1308 = vmatpush1.xpose.msra.mxu0 0.0
    %1309 = vmatprep.subr.mxu0 0.0
    %1310 = vmatpush1.xpose.msra.mxu0 0.0
    %1311 = vmatprep.subr.mxu0 0.0
    %1312 = vmatpush1.xpose.msra.mxu0 0.0
    %1313 = vmatprep.subr.mxu0 0.0
    %1314 = vmatpush1.xpose.msra.mxu0 0.0
    %1315 = vmatprep.subr.mxu0 0.0
    %1316 = vmatpush1.xpose.msra.mxu0 0.0
    %1317 = vmatprep.subr.mxu0 0.0
    %1318 = vmatpush1.xpose.msra.mxu0 0.0
    %1319 = vmatprep.mubr.f32.mxu0 0.0
    %1320 = vmatmul.mubr.f32.gmra.mrb[0].mxu0 %v1251
    %v1321 = vpop.f32.mrb[0].mxu0
    %v1322 = vadd.f32 0.0, %v1321
    %v1323 = vpop.f32.mrb[0].mxu0
    %1324 = vdwg.mxu0
    %v1325 = vsel %vm183, %v1244, -inf
    %1326 = vmax.xlane.f32.xlu0 %v1325
    %v1327 = vpop.xlane.xlu0 %1326
    %v1328 = vsel %vm183, %v1322, -inf
    %1329 = vmax.xlane.f32.xlu0 %v1328
    %v1330 = vpop.xlane.xlu0 %1329
    %v1331 = vsub.f32 %v1244, %v1327
    %v1332 = vsub.f32 %v1322, %v1330
    %v1333 = vmul.f32 %v1331, 1.442695
    %v1334 = vpow.pop %v1333
    %v1335 = vmul.f32 %v1332, 1.442695
    %v1336 = vpow.pop %v1335
    %v1337 = vsel %vm183, %v1334, 0.0
    %1338 = vadd.xlane.f32.xlu0 %v1337
    %v1339 = vpop.xlane.xlu0 %1338
    %v1340 = vsel %vm183, %v1336, 0.0
    %1341 = vadd.xlane.f32.xlu0 %v1340
    %v1342 = vpop.xlane.xlu0 %1341
    %v1343 = vrcp.pop %v1339
    %v1344 = vrcp.pop %v1342
    %v1345 = vmul.f32 %v1334, %v1343
    %v1346 = vmul.f32 %v1336, %v1344
    %1347 = vrot.lane.b32.xlu0 %v172, 40
    %v1348 = vpop.permute.xlu0 %1347
    %v1351 = vsel %vm183, %v1345, 0
    %1353 = vmatprep.subr.mxu0 0.0
    %1354 = vmatpush1.msra.mxu0 %v1348
    %1355 = vmatprep.subr.mxu0 0.0
    %1356 = vmatpush1.msra.mxu0 0.0
    %1357 = vmatprep.subr.mxu0 0.0
    %1358 = vmatpush1.msra.mxu0 0.0
    %1359 = vmatprep.subr.mxu0 0.0
    %1360 = vmatpush1.msra.mxu0 0.0
    %1361 = vmatprep.subr.mxu0 0.0
    %1362 = vmatpush1.msra.mxu0 0.0
    %1363 = vmatprep.subr.mxu0 0.0
    %1364 = vmatpush1.msra.mxu0 0.0
    %1365 = vmatprep.subr.mxu0 0.0
    %1366 = vmatpush1.msra.mxu0 0.0
    %1367 = vmatprep.subr.mxu0 0.0
    %1368 = vmatpush1.msra.mxu0 0.0
    %1369 = vmatprep.subr.mxu0 0.0
    %1370 = vmatpush1.msra.mxu0 0.0
    %1371 = vmatprep.subr.mxu0 0.0
    %1372 = vmatpush1.msra.mxu0 0.0
    %1373 = vmatprep.subr.mxu0 0.0
    %1374 = vmatpush1.msra.mxu0 0.0
    %1375 = vmatprep.subr.mxu0 0.0
    %1376 = vmatpush1.msra.mxu0 0.0
    %1377 = vmatprep.subr.mxu0 0.0
    %1378 = vmatpush1.msra.mxu0 0.0
    %1379 = vmatprep.subr.mxu0 0.0
    %1380 = vmatpush1.msra.mxu0 0.0
    %1381 = vmatprep.subr.mxu0 0.0
    %1382 = vmatpush1.msra.mxu0 0.0
    %1383 = vmatprep.subr.mxu0 0.0
    %1384 = vmatpush1.msra.mxu0 0.0
    %1385 = vmatprep.subr.mxu0 0.0
    %1386 = vmatpush1.msra.mxu0 0.0
    %1387 = vmatprep.subr.mxu0 0.0
    %1388 = vmatpush1.msra.mxu0 0.0
    %1389 = vmatprep.subr.mxu0 0.0
    %1390 = vmatpush1.msra.mxu0 0.0
    %1391 = vmatprep.subr.mxu0 0.0
    %1392 = vmatpush1.msra.mxu0 0.0
    %1393 = vmatprep.subr.mxu0 0.0
    %1394 = vmatpush1.msra.mxu0 0.0
    %1395 = vmatprep.subr.mxu0 0.0
    %1396 = vmatpush1.msra.mxu0 0.0
    %1397 = vmatprep.subr.mxu0 0.0
    %1398 = vmatpush1.msra.mxu0 0.0
    %1399 = vmatprep.subr.mxu0 0.0
    %1400 = vmatpush1.msra.mxu0 0.0
    %1401 = vmatprep.subr.mxu0 0.0
    %1402 = vmatpush1.msra.mxu0 0.0
    %1403 = vmatprep.subr.mxu0 0.0
    %1404 = vmatpush1.msra.mxu0 0.0
    %1405 = vmatprep.subr.mxu0 0.0
    %1406 = vmatpush1.msra.mxu0 0.0
    %1407 = vmatprep.subr.mxu0 0.0
    %1408 = vmatpush1.msra.mxu0 0.0
    %1409 = vmatprep.subr.mxu0 0.0
    %1410 = vmatpush1.msra.mxu0 0.0
    %1411 = vmatprep.subr.mxu0 0.0
    %1412 = vmatpush1.msra.mxu0 0.0
    %1413 = vmatprep.subr.mxu0 0.0
    %1414 = vmatpush1.msra.mxu0 0.0
    %1415 = vmatprep.subr.mxu0 0.0
    %1416 = vmatpush1.msra.mxu0 0.0
    %1417 = vmatprep.mubr.f32.mxu0 0.0
    %1418 = vmatmul.mubr.f32.gmra.mrb[0].mxu0 %v1351
    %v1419 = vpop.f32.mrb[0].mxu0
    %v1420 = vadd.f32 0.0, %v1419
    %v1421 = vpop.f32.mrb[0].mxu0
    %1422 = vdwg.mxu0
    %1423 = vrot.lane.b32.xlu0 %v177, 40
    %v1424 = vpop.permute.xlu0 %1423
    %v1427 = vsel %vm183, %v1346, 0
    %1429 = vmatprep.subr.mxu0 0.0
    %1430 = vmatpush1.msra.mxu0 %v1424
    %1431 = vmatprep.subr.mxu0 0.0
    %1432 = vmatpush1.msra.mxu0 0.0
    %1433 = vmatprep.subr.mxu0 0.0
    %1434 = vmatpush1.msra.mxu0 0.0
    %1435 = vmatprep.subr.mxu0 0.0
    %1436 = vmatpush1.msra.mxu0 0.0
    %1437 = vmatprep.subr.mxu0 0.0
    %1438 = vmatpush1.msra.mxu0 0.0
    %1439 = vmatprep.subr.mxu0 0.0
    %1440 = vmatpush1.msra.mxu0 0.0
    %1441 = vmatprep.subr.mxu0 0.0
    %1442 = vmatpush1.msra.mxu0 0.0
    %1443 = vmatprep.subr.mxu0 0.0
    %1444 = vmatpush1.msra.mxu0 0.0
    %1445 = vmatprep.subr.mxu0 0.0
    %1446 = vmatpush1.msra.mxu0 0.0
    %1447 = vmatprep.subr.mxu0 0.0
    %1448 = vmatpush1.msra.mxu0 0.0
    %1449 = vmatprep.subr.mxu0 0.0
    %1450 = vmatpush1.msra.mxu0 0.0
    %1451 = vmatprep.subr.mxu0 0.0
    %1452 = vmatpush1.msra.mxu0 0.0
    %1453 = vmatprep.subr.mxu0 0.0
    %1454 = vmatpush1.msra.mxu0 0.0
    %1455 = vmatprep.subr.mxu0 0.0
    %1456 = vmatpush1.msra.mxu0 0.0
    %1457 = vmatprep.subr.mxu0 0.0
    %1458 = vmatpush1.msra.mxu0 0.0
    %1459 = vmatprep.subr.mxu0 0.0
    %1460 = vmatpush1.msra.mxu0 0.0
    %1461 = vmatprep.subr.mxu0 0.0
    %1462 = vmatpush1.msra.mxu0 0.0
    %1463 = vmatprep.subr.mxu0 0.0
    %1464 = vmatpush1.msra.mxu0 0.0
    %1465 = vmatprep.subr.mxu0 0.0
    %1466 = vmatpush1.msra.mxu0 0.0
    %1467 = vmatprep.subr.mxu0 0.0
    %1468 = vmatpush1.msra.mxu0 0.0
    %1469 = vmatprep.subr.mxu0 0.0
    %1470 = vmatpush1.msra.mxu0 0.0
    %1471 = vmatprep.subr.mxu0 0.0
    %1472 = vmatpush1.msra.mxu0 0.0
    %1473 = vmatprep.subr.mxu0 0.0
    %1474 = vmatpush1.msra.mxu0 0.0
    %1475 = vmatprep.subr.mxu0 0.0
    %1476 = vmatpush1.msra.mxu0 0.0
    %1477 = vmatprep.subr.mxu0 0.0
    %1478 = vmatpush1.msra.mxu0 0.0
    %1479 = vmatprep.subr.mxu0 0.0
    %1480 = vmatpush1.msra.mxu0 0.0
    %1481 = vmatprep.subr.mxu0 0.0
    %1482 = vmatpush1.msra.mxu0 0.0
    %1483 = vmatprep.subr.mxu0 0.0
    %1484 = vmatpush1.msra.mxu0 0.0
    %1485 = vmatprep.subr.mxu0 0.0
    %1486 = vmatpush1.msra.mxu0 0.0
    %1487 = vmatprep.subr.mxu0 0.0
    %1488 = vmatpush1.msra.mxu0 0.0
    %1489 = vmatprep.subr.mxu0 0.0
    %1490 = vmatpush1.msra.mxu0 0.0
    %1491 = vmatprep.subr.mxu0 0.0
    %1492 = vmatpush1.msra.mxu0 0.0
    %1493 = vmatprep.mubr.f32.mxu0 0.0
    %1494 = vmatmul.mubr.f32.gmra.mrb[0].mxu0 %v1427
    %v1495 = vpop.f32.mrb[0].mxu0
    %v1496 = vadd.f32 0.0, %v1495
    %v1497 = vpop.f32.mrb[0].mxu0
    %1498 = vdwg.mxu0
    %1501 = vrot.lane.b32.xlu0 %v760, 8
    %v1502 = vpop.permute.xlu0 %1501
    %1503 = vrot.lane.b32.xlu0 %v836, 8
    %v1504 = vpop.permute.xlu0 %1503
    %1509 = vrot.lane.b32.xlu0 %v1090, 16
    %v1510 = vpop.permute.xlu0 %1509
    %1511 = vrot.lane.b32.xlu0 %v1166, 16
    %v1512 = vpop.permute.xlu0 %1511
    %1517 = vrot.lane.b32.xlu0 %v1420, 24
    %v1518 = vpop.permute.xlu0 %1517
    %1519 = vrot.lane.b32.xlu0 %v1496, 24
    %v1520 = vpop.permute.xlu0 %1519
    %v1523 = vsel %vm183, %v430, %v1502
    %v1524 = vsel %vm183, %v506, %v1504
    %vm1525 = vcmask 130048
    %v1526 = vsel %vm1525, %v1523, %v1510
    %v1527 = vsel %vm1525, %v1524, %v1512
    %vm1528 = vcmask 195584
    %v1529 = vsel %vm1528, %v1526, %v1518
    %v1530 = vsel %vm1528, %v1527, %v1520
    %v1531 = vld [vmem:[#allocation7] sm:$0xff]
    %v1532 = vld [vmem:[#allocation7 + $0x8] sm:$0xff]
    %v1533 = vld [vmem:[#allocation7 + $0x10] sm:$0xff]
    %v1534 = vld [vmem:[#allocation7 + $0x18] sm:$0xff]
    %v1535 = vld [vmem:[%s4] sm:$0x1]
    %v1537 = vlaneseq
    %v1538 = vshrl.u32 %v1537, 7
    %v1539 = vsub.s32 0, %v1538
    %v1540 = vrot.slane %v1535, %v1539
    %v1543 = vsel %vm98, %v1529, 0
    %v1546 = vsel %vm98, %v1530, 0
    %1548 = vmatprep.subr.mxu0 0.0
    %1549 = vmatpush1.msra.mxu0 %v1531
    %1550 = vmatprep.subr.mxu0 0.0
    %1551 = vmatpush1.msra.mxu0 %v1532
    %1552 = vmatprep.subr.mxu0 0.0
    %1553 = vmatpush1.msra.mxu0 %v1533
    %1554 = vmatprep.subr.mxu0 0.0
    %1555 = vmatpush1.msra.mxu0 %v1534
    %1556 = vmatprep.subr.mxu0 0.0
    %1557 = vmatpush1.msra.mxu0 0.0
    %1558 = vmatprep.subr.mxu0 0.0
    %1559 = vmatpush1.msra.mxu0 0.0
    %1560 = vmatprep.subr.mxu0 0.0
    %1561 = vmatpush1.msra.mxu0 0.0
    %1562 = vmatprep.subr.mxu0 0.0
    %1563 = vmatpush1.msra.mxu0 0.0
    %1564 = vmatprep.subr.mxu0 0.0
    %1565 = vmatpush1.msra.mxu0 0.0
    %1566 = vmatprep.subr.mxu0 0.0
    %1567 = vmatpush1.msra.mxu0 0.0
    %1568 = vmatprep.subr.mxu0 0.0
    %1569 = vmatpush1.msra.mxu0 0.0
    %1570 = vmatprep.subr.mxu0 0.0
    %1571 = vmatpush1.msra.mxu0 0.0
    %1572 = vmatprep.subr.mxu0 0.0
    %1573 = vmatpush1.msra.mxu0 0.0
    %1574 = vmatprep.subr.mxu0 0.0
    %1575 = vmatpush1.msra.mxu0 0.0
    %1576 = vmatprep.subr.mxu0 0.0
    %1577 = vmatpush1.msra.mxu0 0.0
    %1578 = vmatprep.subr.mxu0 0.0
    %1579 = vmatpush1.msra.mxu0 0.0
    %1580 = vmatprep.subr.mxu0 0.0
    %1581 = vmatpush1.msra.mxu0 0.0
    %1582 = vmatprep.subr.mxu0 0.0
    %1583 = vmatpush1.msra.mxu0 0.0
    %1584 = vmatprep.subr.mxu0 0.0
    %1585 = vmatpush1.msra.mxu0 0.0
    %1586 = vmatprep.subr.mxu0 0.0
    %1587 = vmatpush1.msra.mxu0 0.0
    %1588 = vmatprep.subr.mxu0 0.0
    %1589 = vmatpush1.msra.mxu0 0.0
    %1590 = vmatprep.subr.mxu0 0.0
    %1591 = vmatpush1.msra.mxu0 0.0
    %1592 = vmatprep.subr.mxu0 0.0
    %1593 = vmatpush1.msra.mxu0 0.0
    %1594 = vmatprep.subr.mxu0 0.0
    %1595 = vmatpush1.msra.mxu0 0.0
    %1596 = vmatprep.subr.mxu0 0.0
    %1597 = vmatpush1.msra.mxu0 0.0
    %1598 = vmatprep.subr.mxu0 0.0
    %1599 = vmatpush1.msra.mxu0 0.0
    %1600 = vmatprep.subr.mxu0 0.0
    %1601 = vmatpush1.msra.mxu0 0.0
    %1602 = vmatprep.subr.mxu0 0.0
    %1603 = vmatpush1.msra.mxu0 0.0
    %1604 = vmatprep.subr.mxu0 0.0
    %1605 = vmatpush1.msra.mxu0 0.0
    %1606 = vmatprep.subr.mxu0 0.0
    %1607 = vmatpush1.msra.mxu0 0.0
    %1608 = vmatprep.subr.mxu0 0.0
    %1609 = vmatpush1.msra.mxu0 0.0
    %1610 = vmatprep.subr.mxu0 0.0
    %1611 = vmatpush1.msra.mxu0 0.0
    %1612 = vmatprep.mubr.f32.mxu0 0.0
    %1613 = vmatmul.mubr.f32.gmra.mrb[0].mxu0 %v1543
    %v1614 = vpop.f32.mrb[0].mxu0
    %v1615 = vadd.f32 %v1540, %v1614
    %v1616 = vpop.f32.mrb[0].mxu0
    %1617 = vmatprep.mubr.f32.mxu0 0.0
    %1618 = vmatmul.mubr.f32.gmra.mrb[0].mxu0 %v1546
    %v1619 = vpop.f32.mrb[0].mxu0
    %v1620 = vadd.f32 %v1540, %v1619
    %v1621 = vpop.f32.mrb[0].mxu0
    %1622 = vdwg.mxu0
    %v1623 = vld [vmem:[#allocation8] sm:$0xff]
    %v1624 = vld [vmem:[#allocation8 + $0x8] sm:$0xff]
    %v1625 = vld [vmem:[#allocation8 + $0x10] sm:$0xff]
    %v1626 = vld [vmem:[#allocation8 + $0x18] sm:$0xff]
    %v1627 = vld [vmem:[%s6] sm:$0x1]
    %v1629 = vlaneseq
    %v1630 = vshrl.u32 %v1629, 7
    %v1631 = vsub.s32 0, %v1630
    %v1632 = vrot.slane %v1627, %v1631
    %v1635 = vsel %vm98, %v1615, 0
    %v1638 = vsel %vm98, %v1620, 0
    %1640 = vmatprep.subr.mxu0 0.0
    %1641 = vmatpush1.msra.mxu0 %v1623
    %1642 = vmatprep.subr.mxu0 0.0
    %1643 = vmatpush1.msra.mxu0 %v1624
    %1644 = vmatprep.subr.mxu0 0.0
    %1645 = vmatpush1.msra.mxu0 %v1625
    %1646 = vmatprep.subr.mxu0 0.0
    %1647 = vmatpush1.msra.mxu0 %v1626
    %1648 = vmatprep.subr.mxu0 0.0
    %1649 = vmatpush1.msra.mxu0 0.0
    %1650 = vmatprep.subr.mxu0 0.0
    %1651 = vmatpush1.msra.mxu0 0.0
    %1652 = vmatprep.subr.mxu0 0.0
    %1653 = vmatpush1.msra.mxu0 0.0
    %1654 = vmatprep.subr.mxu0 0.0
    %1655 = vmatpush1.msra.mxu0 0.0
    %1656 = vmatprep.subr.mxu0 0.0
    %1657 = vmatpush1.msra.mxu0 0.0
    %1658 = vmatprep.subr.mxu0 0.0
    %1659 = vmatpush1.msra.mxu0 0.0
    %1660 = vmatprep.subr.mxu0 0.0
    %1661 = vmatpush1.msra.mxu0 0.0
    %1662 = vmatprep.subr.mxu0 0.0
    %1663 = vmatpush1.msra.mxu0 0.0
    %1664 = vmatprep.subr.mxu0 0.0
    %1665 = vmatpush1.msra.mxu0 0.0
    %1666 = vmatprep.subr.mxu0 0.0
    %1667 = vmatpush1.msra.mxu0 0.0
    %1668 = vmatprep.subr.mxu0 0.0
    %1669 = vmatpush1.msra.mxu0 0.0
    %1670 = vmatprep.subr.mxu0 0.0
    %1671 = vmatpush1.msra.mxu0 0.0
    %1672 = vmatprep.subr.mxu0 0.0
    %1673 = vmatpush1.msra.mxu0 0.0
    %1674 = vmatprep.subr.mxu0 0.0
    %1675 = vmatpush1.msra.mxu0 0.0
    %1676 = vmatprep.subr.mxu0 0.0
    %1677 = vmatpush1.msra.mxu0 0.0
    %1678 = vmatprep.subr.mxu0 0.0
    %1679 = vmatpush1.msra.mxu0 0.0
    %1680 = vmatprep.subr.mxu0 0.0
    %1681 = vmatpush1.msra.mxu0 0.0
    %1682 = vmatprep.subr.mxu0 0.0
    %1683 = vmatpush1.msra.mxu0 0.0
    %1684 = vmatprep.subr.mxu0 0.0
    %1685 = vmatpush1.msra.mxu0 0.0
    %1686 = vmatprep.subr.mxu0 0.0
    %1687 = vmatpush1.msra.mxu0 0.0
    %1688 = vmatprep.subr.mxu0 0.0
    %1689 = vmatpush1.msra.mxu0 0.0
    %1690 = vmatprep.subr.mxu0 0.0
    %1691 = vmatpush1.msra.mxu0 0.0
    %1692 = vmatprep.subr.mxu0 0.0
    %1693 = vmatpush1.msra.mxu0 0.0
    %1694 = vmatprep.subr.mxu0 0.0
    %1695 = vmatpush1.msra.mxu0 0.0
    %1696 = vmatprep.subr.mxu0 0.0
    %1697 = vmatpush1.msra.mxu0 0.0
    %1698 = vmatprep.subr.mxu0 0.0
    %1699 = vmatpush1.msra.mxu0 0.0
    %1700 = vmatprep.subr.mxu0 0.0
    %1701 = vmatpush1.msra.mxu0 0.0
    %1702 = vmatprep.subr.mxu0 0.0
    %1703 = vmatpush1.msra.mxu0 0.0
    %1704 = vmatprep.mubr.f32.mxu0 0.0
    %1705 = vmatmul.mubr.f32.gmra.mrb[0].mxu0 %v1635
    %v1706 = vpop.f32.mrb[0].mxu0
    %v1707 = vadd.f32 %v1632, %v1706
    %v1708 = vpop.f32.mrb[0].mxu0
    %1709 = vmatprep.mubr.f32.mxu0 0.0
    %1710 = vmatmul.mubr.f32.gmra.mrb[0].mxu0 %v1638
    %v1711 = vpop.f32.mrb[0].mxu0
    %v1712 = vadd.f32 %v1632, %v1711
    %v1713 = vpop.f32.mrb[0].mxu0
    %1714 = vdwg.mxu0
    %v1715 = vtanh.pop %v1707
    %v1716 = vtanh.pop %v1712
    %v1717 = vld [vmem:[%s7] sm:$0x1]
    %v1719 = vlaneseq
    %v1720 = vshrl.u32 %v1719, 7
    %v1721 = vsub.s32 0, %v1720
    %v1722 = vrot.slane %v1717, %v1721
    %v1724 = vmul.f32 %v1715, %v1722
    %v1725 = vmul.f32 %v1716, %v1722
    %v1726 = vsel %vm98, %v1724, 0.0
    %1727 = vadd.xlane.f32.xlu0 %v1726
    %v1728 = vpop.xlane.xlu0 %1727
    %v1729 = vsel %vm98, %v1725, 0.0
    %1730 = vadd.xlane.f32.xlu0 %v1729
    %v1731 = vpop.xlane.xlu0 %1730
    %v1732 = vrot.slane %v1728, 4
    %v1733 = vmax.f32 %v1728, %v1732
    %v1734 = vrot.slane %v1733, 2
    %v1735 = vmax.f32 %v1733, %v1734
    %v1736 = vrot.slane %v1735, 1
    %v1737 = vmax.f32 %v1735, %v1736
    %v1738 = vrot.slane %v1731, 4
    %v1739 = vmax.f32 %v1731, %v1738
    %v1740 = vrot.slane %v1739, 2
    %v1741 = vmax.f32 %v1739, %v1740
    %v1742 = vrot.slane %v1741, 1
    %v1743 = vmax.f32 %v1741, %v1742
    %v1744 = vsub.f32 %v1728, %v1737
    %v1745 = vsub.f32 %v1731, %v1743
    %v1746 = vmul.f32 %v1744, 1.442695
    %v1747 = vpow.pop %v1746
    %v1748 = vmul.f32 %v1745, 1.442695
    %v1749 = vpow.pop %v1748
    %v1750 = vrot.slane %v1747, 4
    %v1751 = vadd.f32 %v1747, %v1750
    %v1752 = vrot.slane %v1751, 2
    %v1753 = vadd.f32 %v1751, %v1752
    %v1754 = vrot.slane %v1753, 1
    %v1755 = vadd.f32 %v1753, %v1754
    %v1756 = vrot.slane %v1749, 4
    %v1757 = vadd.f32 %v1749, %v1756
    %v1758 = vrot.slane %v1757, 2
    %v1759 = vadd.f32 %v1757, %v1758
    %v1760 = vrot.slane %v1759, 1
    %v1761 = vadd.f32 %v1759, %v1760
    %v1762 = vrcp.pop %v1755
    %v1763 = vrcp.pop %v1761
    %v1764 = vmul.f32 %v1747, %v1762
    %v1765 = vmul.f32 %v1749, %v1763
    %v1766 = vmul.f32 %v1764, %v1615
    %v1767 = vmul.f32 %v1765, %v1620
    %v1768 = vsel %vm98, %v1766, 0.0
    %v1769 = vrot.slane %v1768, 4
    %v1770 = vadd.f32 %v1768, %v1769
    %v1771 = vrot.slane %v1770, 2
    %v1772 = vadd.f32 %v1770, %v1771
    %v1773 = vrot.slane %v1772, 1
    %v1774 = vadd.f32 %v1772, %v1773
    %v1775 = vsel %vm98, %v1767, 0.0
    %v1776 = vrot.slane %v1775, 4
    %v1777 = vadd.f32 %v1775, %v1776
    %v1778 = vrot.slane %v1777, 2
    %v1779 = vadd.f32 %v1777, %v1778
    %v1780 = vrot.slane %v1779, 1
    %v1781 = vadd.f32 %v1779, %v1780
    %vm1784 = vcmask 1041409
    %v1785 = vsel %vm1784, %v1781, %v1774
    %vm1787 = vcmask 254976
    %1788 = vst.msk [vmem:[#allocation10] sm:$0x3] %vm1787, %v1785
    // Predicated region
    $region50: #{tpu_custom_call.1} parent=1 // pred_check
      _
    $region51: #{tpu_custom_call.1} parent=1 // pred_check_branch
      %1790 = sbr.rel (0) target = $region53
    $region52: #{tpu_custom_call.1} parent=1 // pred_region
      %s1792 = ssub.s32 32, 32
      %1793 = vsyncadd [#allocation4], %s1792
      %s1795 = sshll.u32 [#allocation10], 4
      %s1796 = int_to_ptr.vmem [resolvable:$true] %s1795
      %1798 = dma.vmem_to_hbm [thread:$0]  %s1796, 32, %s8, [#allocation4]
    $region53: #{tpu_custom_call.1} parent=1 // pred_fallthru
      _
    // Predicated region
    $region54: #{tpu_custom_call.1} parent=1 // pred_check
      _
    $region55: #{tpu_custom_call.1} parent=1 // pred_check_branch
      %1800 = sbr.rel (0) target = $region57
    $region56: #{tpu_custom_call.1} parent=1 // pred_region
      %1801 = dma.done [#allocation4], 32
    $region57: #{tpu_custom_call.1} parent=1 // pred_fallthru
      _
    %1802 = vsyncpa [#allocation3], 1
    %1803 = vsyncpa [#allocation6], 1
    %1804 = vsyncpa [#allocation9], 1
    %1805 = vsyncpa [#allocation4], 1

</llo_original>
